<compile_context>
chip_gen: v7x
topology: tpu7x:2x2x1
jax: 0.10.0
libtpu: 0.0.40
codegen_flags: <defaults>
</compile_context>

<pallas_src>
import functools

import jax
import jax.numpy as jnp
from jax import lax
from jax.experimental import pallas as pl
from jax.experimental.pallas import tpu as pltpu


def _round_up(n, m):
    return ((n + m - 1) // m) * m


# ----------------------------------------------------------------------------
# Pallas kernel: one grid step == TS timesteps; all layers advanced per step.
# State scratch layout (lane axis): [ x_t (I_pad) | h_0 (H_pad) | ... | h_{L-1} ]
# Packed weight slab rows:          [ Wih_0^T ; Whh_0^T ; Wih_1^T ; Whh_1^T ; ... ]
# ----------------------------------------------------------------------------
def rnn_kernel(x_ref,        # (TS, B_pad, I_pad)  chunk of the input (time-major)
               w_ref,        # (I_pad + (2L-1)*H_pad, H_pad)  packed, transposed, zero-padded
               b_ref,        # (L, H_pad)   folded biases (b_ih + b_hh), zero-padded
               wo_ref,       # (H_pad, C_pad)  fc weight, transposed, zero-padded
               bo_ref,       # (1, C_pad)      fc bias, zero-padded
               out_ref,      # (B_pad, C_pad)  fc(out[:, -1, :]) lane-padded
               st_ref,       # VMEM scratch (B_pad, I_pad + L*H_pad): [x | h_0 | ... | h_{L-1}]
               *, num_layers, i_pad, h_pad, ts, t_total, masked):
    c = pl.program_id(0)
    n_chunks = pl.num_programs(0)
    n_b = st_ref.shape[0]

    # h0 == 0 (matches torch.zeros(num_layers, B, H)); padded lanes stay 0 forever.
    @pl.when(c == 0)
    def _():
        st_ref[:, i_pad:] = jnp.zeros((n_b, num_layers * h_pad), jnp.float32)

    def step(s, carry):
        # Drop this timestep's input into the state slab (lane offset 0, full lanes).
        st_ref[:, 0:i_pad] = x_ref[s]

        off = 0   # lane offset of this layer's fused [input | h_prev] block
        row = 0   # row offset of this layer's [Wih^T; Whh^T] block in the weight slab
        for l in range(num_layers):
            in_dim = i_pad if l == 0 else h_pad
            # Fused input: layer input and this layer's previous hidden are adjacent.
            zin = st_ref[:, off:off + in_dim + h_pad]              # (B, in_dim + H_pad)
            w_l = w_ref[row:row + in_dim + h_pad, :]               # (in_dim + H_pad, H_pad)
            h_new = jnp.tanh(
                jnp.dot(zin, w_l, preferred_element_type=jnp.float32)
                + b_ref[l:l + 1, :])
            if masked:
                # Padded (t >= T) timesteps must not advance the recurrence.
                valid = (c * ts + s) < t_total
                h_new = jnp.where(valid, h_new, zin[:, in_dim:])
            st_ref[:, off + in_dim:off + in_dim + h_pad] = h_new   # 128-aligned store
            # TODO(synk): nn.RNN inter-layer dropout (p=0.5) is identity in eval mode; omitted.
            off += in_dim
            row += in_dim + h_pad
        return carry

    lax.fori_loop(0, ts, step, None, unroll=True)

    # out[:, -1, :] is the top layer's hidden at the final valid timestep -> fc
    @pl.when(c == n_chunks - 1)
    def _():
        h_top = st_ref[:, i_pad + (num_layers - 1) * h_pad:]       # (B_pad, H_pad)
        out_ref[...] = (jnp.dot(h_top, wo_ref[...],
                                preferred_element_type=jnp.float32)
                        + bo_ref[...])


# ----------------------------------------------------------------------------
# Wrapper: parameter packing / padding (glue) + pallas_call
# ----------------------------------------------------------------------------
@functools.partial(jax.jit,
                   static_argnames=("hidden_size", "num_layers", "time_chunk"))
def rnn_forward(x, params, *, hidden_size, num_layers, time_chunk=32):
    B, T, I = x.shape
    H = hidden_size
    C = params["w_fc"].shape[0]

    H_pad = _round_up(H, 128)      # lane-dense hidden
    I_pad = _round_up(I, 128)      # lane-dense input slot (so all state slices are 128-aligned)
    C_pad = _round_up(C, 128)      # lane-dense fc output
    B_pad = _round_up(B, 8)        # sublane-aligned batch

    ts = min(time_chunk, T)        # timesteps per grid step
    T_pad = _round_up(T, ts)
    n_chunks = T_pad // ts
    masked = (T_pad != T)

    # time-major + zero-pad (T, B, I) -> (T_pad, B_pad, I_pad)
    x_tm = jnp.transpose(x.astype(jnp.float32), (1, 0, 2))
    x_tm = jnp.pad(x_tm, ((0, T_pad - T), (0, B_pad - B), (0, I_pad - I)))

    # Pack all recurrent weights (transposed, zero-padded) into one slab and
    # fold the two biases per layer.  Zero padding keeps padded lanes at
    # tanh(0) = 0 forever, so results are exact.
    w_rows, b_rows = [], []
    for l in range(num_layers):
        in_dim = I if l == 0 else H
        in_pad = I_pad if l == 0 else H_pad
        wih_t = jnp.zeros((in_pad, H_pad), jnp.float32).at[:in_dim, :H].set(
            params[f"w_ih_l{l}"].T.astype(jnp.float32))
        whh_t = jnp.zeros((H_pad, H_pad), jnp.float32).at[:H, :H].set(
            params[f"w_hh_l{l}"].T.astype(jnp.float32))
        w_rows += [wih_t, whh_t]
        b_rows.append(jnp.zeros((H_pad,), jnp.float32).at[:H].set(
            params[f"b_ih_l{l}"] + params[f"b_hh_l{l}"]))
    w_slab = jnp.concatenate(w_rows, axis=0)          # (I_pad + (2L-1)*H_pad, H_pad)
    b_slab = jnp.stack(b_rows, axis=0)                # (L, H_pad)

    wo = jnp.zeros((H_pad, C_pad), jnp.float32).at[:H, :C].set(
        params["w_fc"].T.astype(jnp.float32))
    bo = jnp.zeros((1, C_pad), jnp.float32).at[:, :C].set(
        params["b_fc"].astype(jnp.float32))

    kernel = functools.partial(
        rnn_kernel, num_layers=num_layers, i_pad=I_pad, h_pad=H_pad,
        ts=ts, t_total=T, masked=masked)

    out_pad = pl.pallas_call(
        kernel,
        grid=(n_chunks,),
        in_specs=[
            pl.BlockSpec((ts, B_pad, I_pad), lambda c: (c, 0, 0)),  # streamed x chunk
            pl.BlockSpec(w_slab.shape, lambda c: (0, 0)),           # resident weights
            pl.BlockSpec(b_slab.shape, lambda c: (0, 0)),           # resident biases
            pl.BlockSpec(wo.shape, lambda c: (0, 0)),               # resident fc weight
            pl.BlockSpec(bo.shape, lambda c: (0, 0)),               # resident fc bias
        ],
        out_specs=pl.BlockSpec((B_pad, C_pad), lambda c: (0, 0)),   # written once, last chunk
        out_shape=jax.ShapeDtypeStruct((B_pad, C_pad), jnp.float32),
        scratch_shapes=[
            pltpu.VMEM((B_pad, I_pad + num_layers * H_pad), jnp.float32)],
        compiler_params=pltpu.CompilerParams(
            dimension_semantics=("arbitrary",)),                    # recurrence over time
    )(x_tm, w_slab, b_slab, wo, bo)

    return out_pad[:B, :C]


# ----------------------------------------------------------------------------
# Pure-JAX reference (PyTorch nn.RNN with tanh, batch_first, eval mode) + fc
# ----------------------------------------------------------------------------
def rnn_reference(x, params, hidden_size, num_layers):
    B, T, _ = x.shape
    hp = jax.lax.Precision.HIGHEST
    layer_input = x
    for l in range(num_layers):
        wih = params[f"w_ih_l{l}"]
        whh = params[f"w_hh_l{l}"]
        bih = params[f"b_ih_l{l}"]
        bhh = params[f"b_hh_l{l}"]
        h = jnp.zeros((B, hidden_size), jnp.float32)
        outs = []
        for t in range(T):
            h = jnp.tanh(jnp.dot(layer_input[:, t], wih.T, precision=hp) + bih
                         + jnp.dot(h, whh.T, precision=hp) + bhh)
            outs.append(h)
        layer_input = jnp.stack(outs, axis=1)
    last = layer_input[:, -1, :]
    return jnp.dot(last, params["w_fc"].T, precision=hp) + params["b_fc"]


if __name__ == "__main__":
    # small shapes consistent with the module's forward
    B = 8            # batch
    T = 8            # sequence length
    I = 16           # input_size
    H = 32           # hidden_size
    L = 2            # num_layers
    C = 10           # num_classes

    key = jax.random.PRNGKey(0)
    keys = jax.random.split(key, 4 * L + 3)

    def init(k, shape, fan_in):
        bound = 1.0 / (fan_in ** 0.5)
        return jax.random.uniform(k, shape, jnp.float32, -bound, bound)

    params = {}
    ki = 0
    for l in range(L):
        in_dim = I if l == 0 else H
        params[f"w_ih_l{l}"] = init(keys[ki], (H, in_dim), H); ki += 1
        params[f"w_hh_l{l}"] = init(keys[ki], (H, H), H); ki += 1
        params[f"b_ih_l{l}"] = init(keys[ki], (H,), H); ki += 1
        params[f"b_hh_l{l}"] = init(keys[ki], (H,), H); ki += 1
    params["w_fc"] = init(keys[ki], (C, H), H); ki += 1
    params["b_fc"] = init(keys[ki], (C,), H); ki += 1

    x = jax.random.normal(keys[ki], (B, T, I), jnp.float32)

    out = rnn_forward(x, params, hidden_size=H, num_layers=L)
    jax.block_until_ready(out)

    ref = rnn_reference(x, params, H, L)
    assert out.shape == (B, C)
    assert jnp.allclose(out, ref, atol=1e-4, rtol=1e-4), (
        f"max abs diff {jnp.max(jnp.abs(out - ref))}")

    print("KERNEL_OK")
</pallas_src>

<mosaic_0001>
module attributes {stable_mosaic.version = 11 : i64} {
  func.func @rnn_kernel(%arg0: i32, %arg1: memref<8x8x128xf32, #tpu.memory_space<vmem>>, %arg2: memref<512x128xf32, #tpu.memory_space<vmem>>, %arg3: memref<2x128xf32, #tpu.memory_space<vmem>>, %arg4: memref<128x128xf32, #tpu.memory_space<vmem>>, %arg5: memref<1x128xf32, #tpu.memory_space<vmem>>, %arg6: memref<8x128xf32, #tpu.memory_space<vmem>>, %arg7: memref<8x384xf32, #tpu.memory_space<vmem>>) attributes {dimension_semantics = [#tpu.dimension_semantics<arbitrary>], iteration_bounds = array<i64: 1>, scalar_prefetch = 0 : i64, scratch_operands = 1 : i64, tpu.core_type = #tpu.core_type<tc>, window_params = [{transform_indices = @transform_0, window_bounds = array<i64: 8, 8, 128>}, {pipeline_mode = #tpu.pipeline_mode<synchronous>, transform_indices = @transform_1, window_bounds = array<i64: 512, 128>}, {pipeline_mode = #tpu.pipeline_mode<synchronous>, transform_indices = @transform_2, window_bounds = array<i64: 2, 128>}, {pipeline_mode = #tpu.pipeline_mode<synchronous>, transform_indices = @transform_3, window_bounds = array<i64: 128, 128>}, {pipeline_mode = #tpu.pipeline_mode<synchronous>, transform_indices = @transform_4, window_bounds = array<i64: 1, 128>}, {pipeline_mode = #tpu.pipeline_mode<synchronous>, transform_indices = @transform_5, window_bounds = array<i64: 8, 128>}]} {
    %c0_i32 = arith.constant 0 : i32
    %0 = arith.cmpi eq, %arg0, %c0_i32 : i32
    %1 = arith.extui %0 : i1 to i32
    %c0_i32_0 = arith.constant 0 : i32
    %2 = arith.cmpi ne, %1, %c0_i32_0 : i32
    scf.if %2 {
      %cst_175 = arith.constant 0.000000e+00 : f32
      %166 = vector.broadcast %cst_175 : f32 to vector<8x256xf32>
      %c0_176 = arith.constant 0 : index
      %c128_177 = arith.constant 128 : index
      %167 = vector.load %arg7[%c0_176, %c128_177] : memref<8x384xf32, #tpu.memory_space<vmem>>, vector<8x256xf32>
      tpu.vector_store %arg7[%c0_176, %c128_177], %166 {strides = array<i32>} : memref<8x384xf32, #tpu.memory_space<vmem>>, vector<8x256xf32>,
    } else {
    }
    %c0_i32_1 = arith.constant 0 : i32
    %3 = arith.index_cast %c0_i32_1 : i32 to index
    %c0 = arith.constant 0 : index
    %c0_2 = arith.constant 0 : index
    %4 = vector.load %arg1[%3, %c0, %c0_2] : memref<8x8x128xf32, #tpu.memory_space<vmem>>, vector<1x8x128xf32>
    %5 = vector.shape_cast %4 : vector<1x8x128xf32> to vector<8x128xf32>
    %c0_3 = arith.constant 0 : index
    %c0_4 = arith.constant 0 : index
    %6 = vector.load %arg7[%c0_3, %c0_4] : memref<8x384xf32, #tpu.memory_space<vmem>>, vector<8x128xf32>
    tpu.vector_store %arg7[%c0_3, %c0_4], %5 {strides = array<i32>} : memref<8x384xf32, #tpu.memory_space<vmem>>, vector<8x128xf32>,
    %c0_5 = arith.constant 0 : index
    %c0_6 = arith.constant 0 : index
    %7 = vector.load %arg7[%c0_5, %c0_6] : memref<8x384xf32, #tpu.memory_space<vmem>>, vector<8x256xf32>
    %c0_7 = arith.constant 0 : index
    %c0_8 = arith.constant 0 : index
    %8 = vector.load %arg2[%c0_7, %c0_8] : memref<512x128xf32, #tpu.memory_space<vmem>>, vector<256x128xf32>
    %cst = arith.constant dense<0.000000e+00> : vector<8x128xf32>
    %9 = tpu.matmul %7, %8, %cst {dimension_numbers = #tpu.dot_dimension_numbers<[1], [0], [0], [1], [0, 0, 1, 1], [], []>} : vector<8x256xf32>, vector<256x128xf32>, vector<8x128xf32> -> vector<8x128xf32>
    %c0_9 = arith.constant 0 : index
    %c0_10 = arith.constant 0 : index
    %10 = vector.load %arg3[%c0_9, %c0_10] : memref<2x128xf32, #tpu.memory_space<vmem>>, vector<1x128xf32>
    %11 = vector.broadcast %10 : vector<1x128xf32> to vector<8x128xf32>
    %12 = arith.addf %9, %11 : vector<8x128xf32>
    %13 = math.tanh %12 : vector<8x128xf32>
    %c0_11 = arith.constant 0 : index
    %c128 = arith.constant 128 : index
    %14 = vector.load %arg7[%c0_11, %c128] : memref<8x384xf32, #tpu.memory_space<vmem>>, vector<8x128xf32>
    tpu.vector_store %arg7[%c0_11, %c128], %13 {strides = array<i32>} : memref<8x384xf32, #tpu.memory_space<vmem>>, vector<8x128xf32>,
    %c0_12 = arith.constant 0 : index
    %c128_13 = arith.constant 128 : index
    %15 = vector.load %arg7[%c0_12, %c128_13] : memref<8x384xf32, #tpu.memory_space<vmem>>, vector<8x256xf32>
    %c256 = arith.constant 256 : index
    %c0_14 = arith.constant 0 : index
    %16 = vector.load %arg2[%c256, %c0_14] : memref<512x128xf32, #tpu.memory_space<vmem>>, vector<256x128xf32>
    %cst_15 = arith.constant dense<0.000000e+00> : vector<8x128xf32>
    %17 = tpu.matmul %15, %16, %cst_15 {dimension_numbers = #tpu.dot_dimension_numbers<[1], [0], [0], [1], [0, 0, 1, 1], [], []>} : vector<8x256xf32>, vector<256x128xf32>, vector<8x128xf32> -> vector<8x128xf32>
    %c1 = arith.constant 1 : index
    %c0_16 = arith.constant 0 : index
    %18 = vector.load %arg3[%c1, %c0_16] : memref<2x128xf32, #tpu.memory_space<vmem>>, vector<1x128xf32>
    %19 = vector.broadcast %18 : vector<1x128xf32> to vector<8x128xf32>
    %20 = arith.addf %17, %19 : vector<8x128xf32>
    %21 = math.tanh %20 : vector<8x128xf32>
    %c0_17 = arith.constant 0 : index
    %c256_18 = arith.constant 256 : index
    %22 = vector.load %arg7[%c0_17, %c256_18] : memref<8x384xf32, #tpu.memory_space<vmem>>, vector<8x128xf32>
    tpu.vector_store %arg7[%c0_17, %c256_18], %21 {strides = array<i32>} : memref<8x384xf32, #tpu.memory_space<vmem>>, vector<8x128xf32>,
    %c1_i32 = arith.constant 1 : i32
    %23 = arith.index_cast %c1_i32 : i32 to index
    %c0_19 = arith.constant 0 : index
    %c0_20 = arith.constant 0 : index
    %24 = vector.load %arg1[%23, %c0_19, %c0_20] : memref<8x8x128xf32, #tpu.memory_space<vmem>>, vector<1x8x128xf32>
    %25 = vector.shape_cast %24 : vector<1x8x128xf32> to vector<8x128xf32>
    %c0_21 = arith.constant 0 : index
    %c0_22 = arith.constant 0 : index
    %26 = vector.load %arg7[%c0_21, %c0_22] : memref<8x384xf32, #tpu.memory_space<vmem>>, vector<8x128xf32>
    tpu.vector_store %arg7[%c0_21, %c0_22], %25 {strides = array<i32>} : memref<8x384xf32, #tpu.memory_space<vmem>>, vector<8x128xf32>,
    %c0_23 = arith.constant 0 : index
    %c0_24 = arith.constant 0 : index
    %27 = vector.load %arg7[%c0_23, %c0_24] : memref<8x384xf32, #tpu.memory_space<vmem>>, vector<8x256xf32>
    %c0_25 = arith.constant 0 : index
    %c0_26 = arith.constant 0 : index
    %28 = vector.load %arg2[%c0_25, %c0_26] : memref<512x128xf32, #tpu.memory_space<vmem>>, vector<256x128xf32>
    %cst_27 = arith.constant dense<0.000000e+00> : vector<8x128xf32>
    %29 = tpu.matmul %27, %28, %cst_27 {dimension_numbers = #tpu.dot_dimension_numbers<[1], [0], [0], [1], [0, 0, 1, 1], [], []>} : vector<8x256xf32>, vector<256x128xf32>, vector<8x128xf32> -> vector<8x128xf32>
    %c0_28 = arith.constant 0 : index
    %c0_29 = arith.constant 0 : index
    %30 = vector.load %arg3[%c0_28, %c0_29] : memref<2x128xf32, #tpu.memory_space<vmem>>, vector<1x128xf32>
    %31 = vector.broadcast %30 : vector<1x128xf32> to vector<8x128xf32>
    %32 = arith.addf %29, %31 : vector<8x128xf32>
    %33 = math.tanh %32 : vector<8x128xf32>
    %c0_30 = arith.constant 0 : index
    %c128_31 = arith.constant 128 : index
    %34 = vector.load %arg7[%c0_30, %c128_31] : memref<8x384xf32, #tpu.memory_space<vmem>>, vector<8x128xf32>
    tpu.vector_store %arg7[%c0_30, %c128_31], %33 {strides = array<i32>} : memref<8x384xf32, #tpu.memory_space<vmem>>, vector<8x128xf32>,
    %c0_32 = arith.constant 0 : index
    %c128_33 = arith.constant 128 : index
    %35 = vector.load %arg7[%c0_32, %c128_33] : memref<8x384xf32, #tpu.memory_space<vmem>>, vector<8x256xf32>
    %c256_34 = arith.constant 256 : index
    %c0_35 = arith.constant 0 : index
    %36 = vector.load %arg2[%c256_34, %c0_35] : memref<512x128xf32, #tpu.memory_space<vmem>>, vector<256x128xf32>
    %cst_36 = arith.constant dense<0.000000e+00> : vector<8x128xf32>
    %37 = tpu.matmul %35, %36, %cst_36 {dimension_numbers = #tpu.dot_dimension_numbers<[1], [0], [0], [1], [0, 0, 1, 1], [], []>} : vector<8x256xf32>, vector<256x128xf32>, vector<8x128xf32> -> vector<8x128xf32>
    %c1_37 = arith.constant 1 : index
    %c0_38 = arith.constant 0 : index
    %38 = vector.load %arg3[%c1_37, %c0_38] : memref<2x128xf32, #tpu.memory_space<vmem>>, vector<1x128xf32>
    %39 = vector.broadcast %38 : vector<1x128xf32> to vector<8x128xf32>
    %40 = arith.addf %37, %39 : vector<8x128xf32>
    %41 = math.tanh %40 : vector<8x128xf32>
    %c0_39 = arith.constant 0 : index
    %c256_40 = arith.constant 256 : index
    %42 = vector.load %arg7[%c0_39, %c256_40] : memref<8x384xf32, #tpu.memory_space<vmem>>, vector<8x128xf32>
    tpu.vector_store %arg7[%c0_39, %c256_40], %41 {strides = array<i32>} : memref<8x384xf32, #tpu.memory_space<vmem>>, vector<8x128xf32>,
    %c2_i32 = arith.constant 2 : i32
    %43 = arith.index_cast %c2_i32 : i32 to index
    %c0_41 = arith.constant 0 : index
    %c0_42 = arith.constant 0 : index
    %44 = vector.load %arg1[%43, %c0_41, %c0_42] : memref<8x8x128xf32, #tpu.memory_space<vmem>>, vector<1x8x128xf32>
    %45 = vector.shape_cast %44 : vector<1x8x128xf32> to vector<8x128xf32>
    %c0_43 = arith.constant 0 : index
    %c0_44 = arith.constant 0 : index
    %46 = vector.load %arg7[%c0_43, %c0_44] : memref<8x384xf32, #tpu.memory_space<vmem>>, vector<8x128xf32>
    tpu.vector_store %arg7[%c0_43, %c0_44], %45 {strides = array<i32>} : memref<8x384xf32, #tpu.memory_space<vmem>>, vector<8x128xf32>,
    %c0_45 = arith.constant 0 : index
    %c0_46 = arith.constant 0 : index
    %47 = vector.load %arg7[%c0_45, %c0_46] : memref<8x384xf32, #tpu.memory_space<vmem>>, vector<8x256xf32>
    %c0_47 = arith.constant 0 : index
    %c0_48 = arith.constant 0 : index
    %48 = vector.load %arg2[%c0_47, %c0_48] : memref<512x128xf32, #tpu.memory_space<vmem>>, vector<256x128xf32>
    %cst_49 = arith.constant dense<0.000000e+00> : vector<8x128xf32>
    %49 = tpu.matmul %47, %48, %cst_49 {dimension_numbers = #tpu.dot_dimension_numbers<[1], [0], [0], [1], [0, 0, 1, 1], [], []>} : vector<8x256xf32>, vector<256x128xf32>, vector<8x128xf32> -> vector<8x128xf32>
    %c0_50 = arith.constant 0 : index
    %c0_51 = arith.constant 0 : index
    %50 = vector.load %arg3[%c0_50, %c0_51] : memref<2x128xf32, #tpu.memory_space<vmem>>, vector<1x128xf32>
    %51 = vector.broadcast %50 : vector<1x128xf32> to vector<8x128xf32>
    %52 = arith.addf %49, %51 : vector<8x128xf32>
    %53 = math.tanh %52 : vector<8x128xf32>
    %c0_52 = arith.constant 0 : index
    %c128_53 = arith.constant 128 : index
    %54 = vector.load %arg7[%c0_52, %c128_53] : memref<8x384xf32, #tpu.memory_space<vmem>>, vector<8x128xf32>
    tpu.vector_store %arg7[%c0_52, %c128_53], %53 {strides = array<i32>} : memref<8x384xf32, #tpu.memory_space<vmem>>, vector<8x128xf32>,
    %c0_54 = arith.constant 0 : index
    %c128_55 = arith.constant 128 : index
    %55 = vector.load %arg7[%c0_54, %c128_55] : memref<8x384xf32, #tpu.memory_space<vmem>>, vector<8x256xf32>
    %c256_56 = arith.constant 256 : index
    %c0_57 = arith.constant 0 : index
    %56 = vector.load %arg2[%c256_56, %c0_57] : memref<512x128xf32, #tpu.memory_space<vmem>>, vector<256x128xf32>
    %cst_58 = arith.constant dense<0.000000e+00> : vector<8x128xf32>
    %57 = tpu.matmul %55, %56, %cst_58 {dimension_numbers = #tpu.dot_dimension_numbers<[1], [0], [0], [1], [0, 0, 1, 1], [], []>} : vector<8x256xf32>, vector<256x128xf32>, vector<8x128xf32> -> vector<8x128xf32>
    %c1_59 = arith.constant 1 : index
    %c0_60 = arith.constant 0 : index
    %58 = vector.load %arg3[%c1_59, %c0_60] : memref<2x128xf32, #tpu.memory_space<vmem>>, vector<1x128xf32>
    %59 = vector.broadcast %58 : vector<1x128xf32> to vector<8x128xf32>
    %60 = arith.addf %57, %59 : vector<8x128xf32>
    %61 = math.tanh %60 : vector<8x128xf32>
    %c0_61 = arith.constant 0 : index
    %c256_62 = arith.constant 256 : index
    %62 = vector.load %arg7[%c0_61, %c256_62] : memref<8x384xf32, #tpu.memory_space<vmem>>, vector<8x128xf32>
    tpu.vector_store %arg7[%c0_61, %c256_62], %61 {strides = array<i32>} : memref<8x384xf32, #tpu.memory_space<vmem>>, vector<8x128xf32>,
    %c3_i32 = arith.constant 3 : i32
    %63 = arith.index_cast %c3_i32 : i32 to index
    %c0_63 = arith.constant 0 : index
    %c0_64 = arith.constant 0 : index
    %64 = vector.load %arg1[%63, %c0_63, %c0_64] : memref<8x8x128xf32, #tpu.memory_space<vmem>>, vector<1x8x128xf32>
    %65 = vector.shape_cast %64 : vector<1x8x128xf32> to vector<8x128xf32>
    %c0_65 = arith.constant 0 : index
    %c0_66 = arith.constant 0 : index
    %66 = vector.load %arg7[%c0_65, %c0_66] : memref<8x384xf32, #tpu.memory_space<vmem>>, vector<8x128xf32>
    tpu.vector_store %arg7[%c0_65, %c0_66], %65 {strides = array<i32>} : memref<8x384xf32, #tpu.memory_space<vmem>>, vector<8x128xf32>,
    %c0_67 = arith.constant 0 : index
    %c0_68 = arith.constant 0 : index
    %67 = vector.load %arg7[%c0_67, %c0_68] : memref<8x384xf32, #tpu.memory_space<vmem>>, vector<8x256xf32>
    %c0_69 = arith.constant 0 : index
    %c0_70 = arith.constant 0 : index
    %68 = vector.load %arg2[%c0_69, %c0_70] : memref<512x128xf32, #tpu.memory_space<vmem>>, vector<256x128xf32>
    %cst_71 = arith.constant dense<0.000000e+00> : vector<8x128xf32>
    %69 = tpu.matmul %67, %68, %cst_71 {dimension_numbers = #tpu.dot_dimension_numbers<[1], [0], [0], [1], [0, 0, 1, 1], [], []>} : vector<8x256xf32>, vector<256x128xf32>, vector<8x128xf32> -> vector<8x128xf32>
    %c0_72 = arith.constant 0 : index
    %c0_73 = arith.constant 0 : index
    %70 = vector.load %arg3[%c0_72, %c0_73] : memref<2x128xf32, #tpu.memory_space<vmem>>, vector<1x128xf32>
    %71 = vector.broadcast %70 : vector<1x128xf32> to vector<8x128xf32>
    %72 = arith.addf %69, %71 : vector<8x128xf32>
    %73 = math.tanh %72 : vector<8x128xf32>
    %c0_74 = arith.constant 0 : index
    %c128_75 = arith.constant 128 : index
    %74 = vector.load %arg7[%c0_74, %c128_75] : memref<8x384xf32, #tpu.memory_space<vmem>>, vector<8x128xf32>
    tpu.vector_store %arg7[%c0_74, %c128_75], %73 {strides = array<i32>} : memref<8x384xf32, #tpu.memory_space<vmem>>, vector<8x128xf32>,
    %c0_76 = arith.constant 0 : index
    %c128_77 = arith.constant 128 : index
    %75 = vector.load %arg7[%c0_76, %c128_77] : memref<8x384xf32, #tpu.memory_space<vmem>>, vector<8x256xf32>
    %c256_78 = arith.constant 256 : index
    %c0_79 = arith.constant 0 : index
    %76 = vector.load %arg2[%c256_78, %c0_79] : memref<512x128xf32, #tpu.memory_space<vmem>>, vector<256x128xf32>
    %cst_80 = arith.constant dense<0.000000e+00> : vector<8x128xf32>
    %77 = tpu.matmul %75, %76, %cst_80 {dimension_numbers = #tpu.dot_dimension_numbers<[1], [0], [0], [1], [0, 0, 1, 1], [], []>} : vector<8x256xf32>, vector<256x128xf32>, vector<8x128xf32> -> vector<8x128xf32>
    %c1_81 = arith.constant 1 : index
    %c0_82 = arith.constant 0 : index
    %78 = vector.load %arg3[%c1_81, %c0_82] : memref<2x128xf32, #tpu.memory_space<vmem>>, vector<1x128xf32>
    %79 = vector.broadcast %78 : vector<1x128xf32> to vector<8x128xf32>
    %80 = arith.addf %77, %79 : vector<8x128xf32>
    %81 = math.tanh %80 : vector<8x128xf32>
    %c0_83 = arith.constant 0 : index
    %c256_84 = arith.constant 256 : index
    %82 = vector.load %arg7[%c0_83, %c256_84] : memref<8x384xf32, #tpu.memory_space<vmem>>, vector<8x128xf32>
    tpu.vector_store %arg7[%c0_83, %c256_84], %81 {strides = array<i32>} : memref<8x384xf32, #tpu.memory_space<vmem>>, vector<8x128xf32>,
    %c4_i32 = arith.constant 4 : i32
    %83 = arith.index_cast %c4_i32 : i32 to index
    %c0_85 = arith.constant 0 : index
    %c0_86 = arith.constant 0 : index
    %84 = vector.load %arg1[%83, %c0_85, %c0_86] : memref<8x8x128xf32, #tpu.memory_space<vmem>>, vector<1x8x128xf32>
    %85 = vector.shape_cast %84 : vector<1x8x128xf32> to vector<8x128xf32>
    %c0_87 = arith.constant 0 : index
    %c0_88 = arith.constant 0 : index
    %86 = vector.load %arg7[%c0_87, %c0_88] : memref<8x384xf32, #tpu.memory_space<vmem>>, vector<8x128xf32>
    tpu.vector_store %arg7[%c0_87, %c0_88], %85 {strides = array<i32>} : memref<8x384xf32, #tpu.memory_space<vmem>>, vector<8x128xf32>,
    %c0_89 = arith.constant 0 : index
    %c0_90 = arith.constant 0 : index
    %87 = vector.load %arg7[%c0_89, %c0_90] : memref<8x384xf32, #tpu.memory_space<vmem>>, vector<8x256xf32>
    %c0_91 = arith.constant 0 : index
    %c0_92 = arith.constant 0 : index
    %88 = vector.load %arg2[%c0_91, %c0_92] : memref<512x128xf32, #tpu.memory_space<vmem>>, vector<256x128xf32>
    %cst_93 = arith.constant dense<0.000000e+00> : vector<8x128xf32>
    %89 = tpu.matmul %87, %88, %cst_93 {dimension_numbers = #tpu.dot_dimension_numbers<[1], [0], [0], [1], [0, 0, 1, 1], [], []>} : vector<8x256xf32>, vector<256x128xf32>, vector<8x128xf32> -> vector<8x128xf32>
    %c0_94 = arith.constant 0 : index
    %c0_95 = arith.constant 0 : index
    %90 = vector.load %arg3[%c0_94, %c0_95] : memref<2x128xf32, #tpu.memory_space<vmem>>, vector<1x128xf32>
    %91 = vector.broadcast %90 : vector<1x128xf32> to vector<8x128xf32>
    %92 = arith.addf %89, %91 : vector<8x128xf32>
    %93 = math.tanh %92 : vector<8x128xf32>
    %c0_96 = arith.constant 0 : index
    %c128_97 = arith.constant 128 : index
    %94 = vector.load %arg7[%c0_96, %c128_97] : memref<8x384xf32, #tpu.memory_space<vmem>>, vector<8x128xf32>
    tpu.vector_store %arg7[%c0_96, %c128_97], %93 {strides = array<i32>} : memref<8x384xf32, #tpu.memory_space<vmem>>, vector<8x128xf32>,
    %c0_98 = arith.constant 0 : index
    %c128_99 = arith.constant 128 : index
    %95 = vector.load %arg7[%c0_98, %c128_99] : memref<8x384xf32, #tpu.memory_space<vmem>>, vector<8x256xf32>
    %c256_100 = arith.constant 256 : index
    %c0_101 = arith.constant 0 : index
    %96 = vector.load %arg2[%c256_100, %c0_101] : memref<512x128xf32, #tpu.memory_space<vmem>>, vector<256x128xf32>
    %cst_102 = arith.constant dense<0.000000e+00> : vector<8x128xf32>
    %97 = tpu.matmul %95, %96, %cst_102 {dimension_numbers = #tpu.dot_dimension_numbers<[1], [0], [0], [1], [0, 0, 1, 1], [], []>} : vector<8x256xf32>, vector<256x128xf32>, vector<8x128xf32> -> vector<8x128xf32>
    %c1_103 = arith.constant 1 : index
    %c0_104 = arith.constant 0 : index
    %98 = vector.load %arg3[%c1_103, %c0_104] : memref<2x128xf32, #tpu.memory_space<vmem>>, vector<1x128xf32>
    %99 = vector.broadcast %98 : vector<1x128xf32> to vector<8x128xf32>
    %100 = arith.addf %97, %99 : vector<8x128xf32>
    %101 = math.tanh %100 : vector<8x128xf32>
    %c0_105 = arith.constant 0 : index
    %c256_106 = arith.constant 256 : index
    %102 = vector.load %arg7[%c0_105, %c256_106] : memref<8x384xf32, #tpu.memory_space<vmem>>, vector<8x128xf32>
    tpu.vector_store %arg7[%c0_105, %c256_106], %101 {strides = array<i32>} : memref<8x384xf32, #tpu.memory_space<vmem>>, vector<8x128xf32>,
    %c5_i32 = arith.constant 5 : i32
    %103 = arith.index_cast %c5_i32 : i32 to index
    %c0_107 = arith.constant 0 : index
    %c0_108 = arith.constant 0 : index
    %104 = vector.load %arg1[%103, %c0_107, %c0_108] : memref<8x8x128xf32, #tpu.memory_space<vmem>>, vector<1x8x128xf32>
    %105 = vector.shape_cast %104 : vector<1x8x128xf32> to vector<8x128xf32>
    %c0_109 = arith.constant 0 : index
    %c0_110 = arith.constant 0 : index
    %106 = vector.load %arg7[%c0_109, %c0_110] : memref<8x384xf32, #tpu.memory_space<vmem>>, vector<8x128xf32>
    tpu.vector_store %arg7[%c0_109, %c0_110], %105 {strides = array<i32>} : memref<8x384xf32, #tpu.memory_space<vmem>>, vector<8x128xf32>,
    %c0_111 = arith.constant 0 : index
    %c0_112 = arith.constant 0 : index
    %107 = vector.load %arg7[%c0_111, %c0_112] : memref<8x384xf32, #tpu.memory_space<vmem>>, vector<8x256xf32>
    %c0_113 = arith.constant 0 : index
    %c0_114 = arith.constant 0 : index
    %108 = vector.load %arg2[%c0_113, %c0_114] : memref<512x128xf32, #tpu.memory_space<vmem>>, vector<256x128xf32>
    %cst_115 = arith.constant dense<0.000000e+00> : vector<8x128xf32>
    %109 = tpu.matmul %107, %108, %cst_115 {dimension_numbers = #tpu.dot_dimension_numbers<[1], [0], [0], [1], [0, 0, 1, 1], [], []>} : vector<8x256xf32>, vector<256x128xf32>, vector<8x128xf32> -> vector<8x128xf32>
    %c0_116 = arith.constant 0 : index
    %c0_117 = arith.constant 0 : index
    %110 = vector.load %arg3[%c0_116, %c0_117] : memref<2x128xf32, #tpu.memory_space<vmem>>, vector<1x128xf32>
    %111 = vector.broadcast %110 : vector<1x128xf32> to vector<8x128xf32>
    %112 = arith.addf %109, %111 : vector<8x128xf32>
    %113 = math.tanh %112 : vector<8x128xf32>
    %c0_118 = arith.constant 0 : index
    %c128_119 = arith.constant 128 : index
    %114 = vector.load %arg7[%c0_118, %c128_119] : memref<8x384xf32, #tpu.memory_space<vmem>>, vector<8x128xf32>
    tpu.vector_store %arg7[%c0_118, %c128_119], %113 {strides = array<i32>} : memref<8x384xf32, #tpu.memory_space<vmem>>, vector<8x128xf32>,
    %c0_120 = arith.constant 0 : index
    %c128_121 = arith.constant 128 : index
    %115 = vector.load %arg7[%c0_120, %c128_121] : memref<8x384xf32, #tpu.memory_space<vmem>>, vector<8x256xf32>
    %c256_122 = arith.constant 256 : index
    %c0_123 = arith.constant 0 : index
    %116 = vector.load %arg2[%c256_122, %c0_123] : memref<512x128xf32, #tpu.memory_space<vmem>>, vector<256x128xf32>
    %cst_124 = arith.constant dense<0.000000e+00> : vector<8x128xf32>
    %117 = tpu.matmul %115, %116, %cst_124 {dimension_numbers = #tpu.dot_dimension_numbers<[1], [0], [0], [1], [0, 0, 1, 1], [], []>} : vector<8x256xf32>, vector<256x128xf32>, vector<8x128xf32> -> vector<8x128xf32>
    %c1_125 = arith.constant 1 : index
    %c0_126 = arith.constant 0 : index
    %118 = vector.load %arg3[%c1_125, %c0_126] : memref<2x128xf32, #tpu.memory_space<vmem>>, vector<1x128xf32>
    %119 = vector.broadcast %118 : vector<1x128xf32> to vector<8x128xf32>
    %120 = arith.addf %117, %119 : vector<8x128xf32>
    %121 = math.tanh %120 : vector<8x128xf32>
    %c0_127 = arith.constant 0 : index
    %c256_128 = arith.constant 256 : index
    %122 = vector.load %arg7[%c0_127, %c256_128] : memref<8x384xf32, #tpu.memory_space<vmem>>, vector<8x128xf32>
    tpu.vector_store %arg7[%c0_127, %c256_128], %121 {strides = array<i32>} : memref<8x384xf32, #tpu.memory_space<vmem>>, vector<8x128xf32>,
    %c6_i32 = arith.constant 6 : i32
    %123 = arith.index_cast %c6_i32 : i32 to index
    %c0_129 = arith.constant 0 : index
    %c0_130 = arith.constant 0 : index
    %124 = vector.load %arg1[%123, %c0_129, %c0_130] : memref<8x8x128xf32, #tpu.memory_space<vmem>>, vector<1x8x128xf32>
    %125 = vector.shape_cast %124 : vector<1x8x128xf32> to vector<8x128xf32>
    %c0_131 = arith.constant 0 : index
    %c0_132 = arith.constant 0 : index
    %126 = vector.load %arg7[%c0_131, %c0_132] : memref<8x384xf32, #tpu.memory_space<vmem>>, vector<8x128xf32>
    tpu.vector_store %arg7[%c0_131, %c0_132], %125 {strides = array<i32>} : memref<8x384xf32, #tpu.memory_space<vmem>>, vector<8x128xf32>,
    %c0_133 = arith.constant 0 : index
    %c0_134 = arith.constant 0 : index
    %127 = vector.load %arg7[%c0_133, %c0_134] : memref<8x384xf32, #tpu.memory_space<vmem>>, vector<8x256xf32>
    %c0_135 = arith.constant 0 : index
    %c0_136 = arith.constant 0 : index
    %128 = vector.load %arg2[%c0_135, %c0_136] : memref<512x128xf32, #tpu.memory_space<vmem>>, vector<256x128xf32>
    %cst_137 = arith.constant dense<0.000000e+00> : vector<8x128xf32>
    %129 = tpu.matmul %127, %128, %cst_137 {dimension_numbers = #tpu.dot_dimension_numbers<[1], [0], [0], [1], [0, 0, 1, 1], [], []>} : vector<8x256xf32>, vector<256x128xf32>, vector<8x128xf32> -> vector<8x128xf32>
    %c0_138 = arith.constant 0 : index
    %c0_139 = arith.constant 0 : index
    %130 = vector.load %arg3[%c0_138, %c0_139] : memref<2x128xf32, #tpu.memory_space<vmem>>, vector<1x128xf32>
    %131 = vector.broadcast %130 : vector<1x128xf32> to vector<8x128xf32>
    %132 = arith.addf %129, %131 : vector<8x128xf32>
    %133 = math.tanh %132 : vector<8x128xf32>
    %c0_140 = arith.constant 0 : index
    %c128_141 = arith.constant 128 : index
    %134 = vector.load %arg7[%c0_140, %c128_141] : memref<8x384xf32, #tpu.memory_space<vmem>>, vector<8x128xf32>
    tpu.vector_store %arg7[%c0_140, %c128_141], %133 {strides = array<i32>} : memref<8x384xf32, #tpu.memory_space<vmem>>, vector<8x128xf32>,
    %c0_142 = arith.constant 0 : index
    %c128_143 = arith.constant 128 : index
    %135 = vector.load %arg7[%c0_142, %c128_143] : memref<8x384xf32, #tpu.memory_space<vmem>>, vector<8x256xf32>
    %c256_144 = arith.constant 256 : index
    %c0_145 = arith.constant 0 : index
    %136 = vector.load %arg2[%c256_144, %c0_145] : memref<512x128xf32, #tpu.memory_space<vmem>>, vector<256x128xf32>
    %cst_146 = arith.constant dense<0.000000e+00> : vector<8x128xf32>
    %137 = tpu.matmul %135, %136, %cst_146 {dimension_numbers = #tpu.dot_dimension_numbers<[1], [0], [0], [1], [0, 0, 1, 1], [], []>} : vector<8x256xf32>, vector<256x128xf32>, vector<8x128xf32> -> vector<8x128xf32>
    %c1_147 = arith.constant 1 : index
    %c0_148 = arith.constant 0 : index
    %138 = vector.load %arg3[%c1_147, %c0_148] : memref<2x128xf32, #tpu.memory_space<vmem>>, vector<1x128xf32>
    %139 = vector.broadcast %138 : vector<1x128xf32> to vector<8x128xf32>
    %140 = arith.addf %137, %139 : vector<8x128xf32>
    %141 = math.tanh %140 : vector<8x128xf32>
    %c0_149 = arith.constant 0 : index
    %c256_150 = arith.constant 256 : index
    %142 = vector.load %arg7[%c0_149, %c256_150] : memref<8x384xf32, #tpu.memory_space<vmem>>, vector<8x128xf32>
    tpu.vector_store %arg7[%c0_149, %c256_150], %141 {strides = array<i32>} : memref<8x384xf32, #tpu.memory_space<vmem>>, vector<8x128xf32>,
    %c7_i32 = arith.constant 7 : i32
    %143 = arith.index_cast %c7_i32 : i32 to index
    %c0_151 = arith.constant 0 : index
    %c0_152 = arith.constant 0 : index
    %144 = vector.load %arg1[%143, %c0_151, %c0_152] : memref<8x8x128xf32, #tpu.memory_space<vmem>>, vector<1x8x128xf32>
    %145 = vector.shape_cast %144 : vector<1x8x128xf32> to vector<8x128xf32>
    %c0_153 = arith.constant 0 : index
    %c0_154 = arith.constant 0 : index
    %146 = vector.load %arg7[%c0_153, %c0_154] : memref<8x384xf32, #tpu.memory_space<vmem>>, vector<8x128xf32>
    tpu.vector_store %arg7[%c0_153, %c0_154], %145 {strides = array<i32>} : memref<8x384xf32, #tpu.memory_space<vmem>>, vector<8x128xf32>,
    %c0_155 = arith.constant 0 : index
    %c0_156 = arith.constant 0 : index
    %147 = vector.load %arg7[%c0_155, %c0_156] : memref<8x384xf32, #tpu.memory_space<vmem>>, vector<8x256xf32>
    %c0_157 = arith.constant 0 : index
    %c0_158 = arith.constant 0 : index
    %148 = vector.load %arg2[%c0_157, %c0_158] : memref<512x128xf32, #tpu.memory_space<vmem>>, vector<256x128xf32>
    %cst_159 = arith.constant dense<0.000000e+00> : vector<8x128xf32>
    %149 = tpu.matmul %147, %148, %cst_159 {dimension_numbers = #tpu.dot_dimension_numbers<[1], [0], [0], [1], [0, 0, 1, 1], [], []>} : vector<8x256xf32>, vector<256x128xf32>, vector<8x128xf32> -> vector<8x128xf32>
    %c0_160 = arith.constant 0 : index
    %c0_161 = arith.constant 0 : index
    %150 = vector.load %arg3[%c0_160, %c0_161] : memref<2x128xf32, #tpu.memory_space<vmem>>, vector<1x128xf32>
    %151 = vector.broadcast %150 : vector<1x128xf32> to vector<8x128xf32>
    %152 = arith.addf %149, %151 : vector<8x128xf32>
    %153 = math.tanh %152 : vector<8x128xf32>
    %c0_162 = arith.constant 0 : index
    %c128_163 = arith.constant 128 : index
    %154 = vector.load %arg7[%c0_162, %c128_163] : memref<8x384xf32, #tpu.memory_space<vmem>>, vector<8x128xf32>
    tpu.vector_store %arg7[%c0_162, %c128_163], %153 {strides = array<i32>} : memref<8x384xf32, #tpu.memory_space<vmem>>, vector<8x128xf32>,
    %c0_164 = arith.constant 0 : index
    %c128_165 = arith.constant 128 : index
    %155 = vector.load %arg7[%c0_164, %c128_165] : memref<8x384xf32, #tpu.memory_space<vmem>>, vector<8x256xf32>
    %c256_166 = arith.constant 256 : index
    %c0_167 = arith.constant 0 : index
    %156 = vector.load %arg2[%c256_166, %c0_167] : memref<512x128xf32, #tpu.memory_space<vmem>>, vector<256x128xf32>
    %cst_168 = arith.constant dense<0.000000e+00> : vector<8x128xf32>
    %157 = tpu.matmul %155, %156, %cst_168 {dimension_numbers = #tpu.dot_dimension_numbers<[1], [0], [0], [1], [0, 0, 1, 1], [], []>} : vector<8x256xf32>, vector<256x128xf32>, vector<8x128xf32> -> vector<8x128xf32>
    %c1_169 = arith.constant 1 : index
    %c0_170 = arith.constant 0 : index
    %158 = vector.load %arg3[%c1_169, %c0_170] : memref<2x128xf32, #tpu.memory_space<vmem>>, vector<1x128xf32>
    %159 = vector.broadcast %158 : vector<1x128xf32> to vector<8x128xf32>
    %160 = arith.addf %157, %159 : vector<8x128xf32>
    %161 = math.tanh %160 : vector<8x128xf32>
    %c0_171 = arith.constant 0 : index
    %c256_172 = arith.constant 256 : index
    %162 = vector.load %arg7[%c0_171, %c256_172] : memref<8x384xf32, #tpu.memory_space<vmem>>, vector<8x128xf32>
    tpu.vector_store %arg7[%c0_171, %c256_172], %161 {strides = array<i32>} : memref<8x384xf32, #tpu.memory_space<vmem>>, vector<8x128xf32>,
    %c8_i32 = arith.constant 8 : i32
    %c0_i32_173 = arith.constant 0 : i32
    %163 = arith.cmpi eq, %arg0, %c0_i32_173 : i32
    %164 = arith.extui %163 : i1 to i32
    %c0_i32_174 = arith.constant 0 : i32
    %165 = arith.cmpi ne, %164, %c0_i32_174 : i32
    scf.if %165 {
      %c0_175 = arith.constant 0 : index
      %c256_176 = arith.constant 256 : index
      %166 = vector.load %arg7[%c0_175, %c256_176] : memref<8x384xf32, #tpu.memory_space<vmem>>, vector<8x128xf32>
      %c0_177 = arith.constant 0 : index
      %c0_178 = arith.constant 0 : index
      %167 = vector.load %arg4[%c0_177, %c0_178] : memref<128x128xf32, #tpu.memory_space<vmem>>, vector<128x128xf32>
      %cst_179 = arith.constant dense<0.000000e+00> : vector<8x128xf32>
      %168 = tpu.matmul %166, %167, %cst_179 {dimension_numbers = #tpu.dot_dimension_numbers<[1], [0], [0], [1], [0, 0, 1, 1], [], []>} : vector<8x128xf32>, vector<128x128xf32>, vector<8x128xf32> -> vector<8x128xf32>
      %c0_180 = arith.constant 0 : index
      %c0_181 = arith.constant 0 : index
      %169 = vector.load %arg5[%c0_180, %c0_181] : memref<1x128xf32, #tpu.memory_space<vmem>>, vector<1x128xf32>
      %170 = vector.broadcast %169 : vector<1x128xf32> to vector<8x128xf32>
      %171 = arith.addf %168, %170 : vector<8x128xf32>
      %c0_182 = arith.constant 0 : index
      %c0_183 = arith.constant 0 : index
      %172 = vector.load %arg6[%c0_182, %c0_183] : memref<8x128xf32, #tpu.memory_space<vmem>>, vector<8x128xf32>
      tpu.vector_store %arg6[%c0_182, %c0_183], %171 {strides = array<i32>} : memref<8x128xf32, #tpu.memory_space<vmem>>, vector<8x128xf32>,
    } else {
    }
    return
  }
  func.func @transform_0(%arg0: i32) -> (i32, i32, i32) {
    %c0_i32 = arith.constant 0 : i32
    %c0_i32_0 = arith.constant 0 : i32
    %c0_i32_1 = arith.constant 0 : i32
    return %arg0, %c0_i32, %c0_i32_0 : i32, i32, i32
  }
  func.func @transform_1(%arg0: i32) -> (i32, i32) {
    %c0_i32 = arith.constant 0 : i32
    %c0_i32_0 = arith.constant 0 : i32
    %c0_i32_1 = arith.constant 0 : i32
    return %c0_i32, %c0_i32_0 : i32, i32
  }
  func.func @transform_2(%arg0: i32) -> (i32, i32) {
    %c0_i32 = arith.constant 0 : i32
    %c0_i32_0 = arith.constant 0 : i32
    %c0_i32_1 = arith.constant 0 : i32
    return %c0_i32, %c0_i32_0 : i32, i32
  }
  func.func @transform_3(%arg0: i32) -> (i32, i32) {
    %c0_i32 = arith.constant 0 : i32
    %c0_i32_0 = arith.constant 0 : i32
    %c0_i32_1 = arith.constant 0 : i32
    return %c0_i32, %c0_i32_0 : i32, i32
  }
  func.func @transform_4(%arg0: i32) -> (i32, i32) {
    %c0_i32 = arith.constant 0 : i32
    %c0_i32_0 = arith.constant 0 : i32
    %c0_i32_1 = arith.constant 0 : i32
    return %c0_i32, %c0_i32_0 : i32, i32
  }
  func.func @transform_5(%arg0: i32) -> (i32, i32) {
    %c0_i32 = arith.constant 0 : i32
    %c0_i32_0 = arith.constant 0 : i32
    %c0_i32_1 = arith.constant 0 : i32
    return %c0_i32, %c0_i32_0 : i32, i32
  }
}

</mosaic_0001>

<llo_original>
// kernel: rnn_forward.1
$region0: #{rnn_forward.1}
  #allocation0 [shape = 'u32[]', space=smem, size = 0x4, offset = 0x4, fixed_abs, tag = 'smem constant byte address 0x4 - core index']
  #allocation1 [shape = 'u32[144,128]{1,0:T(1,128)}', space=vmem, size = 0x12000, scoped, tag = 'internal scratch']
  #allocation2 [shape = 'f32[8,384]{1,0:T(8,128)}', space=vmem, size = 0x3000, scoped, tag = 'scratch operand']
  %s0 = inlined_call_operand.vmem [shape: f32[8,8,128], index: 0, kind: input, shape index: {}]
  %s1 = inlined_call_operand.vmem [shape: f32[512,128], index: 1, kind: input, shape index: {}]
  %s2 = inlined_call_operand.vmem [shape: f32[2,128], index: 2, kind: input, shape index: {}]
  %s3 = inlined_call_operand.vmem [shape: f32[128,128], index: 3, kind: input, shape index: {}]
  %s4 = inlined_call_operand.vmem [shape: f32[1,128], index: 4, kind: input, shape index: {}]
  %s5 = inlined_call_operand.hbm [shape: f32[8,128], index: 5, kind: output, shape index: {}]
  %s6 = sld [smem:[#allocation0]]
  $region38: #{rnn_forward.1} parent=0
    _
  %s8 = ssub.s32 1, %s6
  %s9 = scalar_select 0, %s8, %s6
  $region1: #{rnn_forward.1} parent=0
    #allocation3 [shape = 'u8[4096]{0}', space=vmem, size = 0x1000, scoped, tag = 'output window, operand 0, single buffered']
    #allocation4 [shape = 's32[1]{0}', space=sflag, size = 0x4, scoped, tag = 'scoped memory for rnn_forward.1']
    %10 = vsyncpa [#allocation4], 0
    // Predicated region
    $region2: #{rnn_forward.1} parent=1 // pred_check
      _
    $region3: #{rnn_forward.1} parent=1 // pred_check_branch
      %12 = sbr.rel (0) target = $region5
    $region4: #{rnn_forward.1} parent=1 // pred_region
      _
    $region5: #{rnn_forward.1} parent=1 // pred_fallthru
      _
    // Predicated region
    $region6: #{rnn_forward.1} parent=1 // pred_check
      _
    $region7: #{rnn_forward.1} parent=1 // pred_check_branch
      %14 = sbr.rel (0) target = $region9
    $region8: #{rnn_forward.1} parent=1 // pred_region
      _
    $region9: #{rnn_forward.1} parent=1 // pred_fallthru
      _
    // Predicated region
    $region10: #{rnn_forward.1} parent=1 // pred_check
      _
    $region11: #{rnn_forward.1} parent=1 // pred_check_branch
      %16 = sbr.rel (0) target = $region13
    $region12: #{rnn_forward.1} parent=1 // pred_region
      _
    $region13: #{rnn_forward.1} parent=1 // pred_fallthru
      _
    // Predicated region
    $region14: #{rnn_forward.1} parent=1 // pred_check
      _
    $region15: #{rnn_forward.1} parent=1 // pred_check_branch
      %18 = sbr.rel (0) target = $region17
    $region16: #{rnn_forward.1} parent=1 // pred_region
      _
    $region17: #{rnn_forward.1} parent=1 // pred_fallthru
      _
    // Predicated region
    $region18: #{rnn_forward.1} parent=1 // pred_check
      _
    $region19: #{rnn_forward.1} parent=1 // pred_check_branch
      %20 = sbr.rel (0) target = $region21
    $region20: #{rnn_forward.1} parent=1 // pred_region
      _
    $region21: #{rnn_forward.1} parent=1 // pred_fallthru
      _
    %p21 = scmp.eq.s32.totalorder 0, 0
    // Predicated region
    $region22: #{rnn_forward.1} parent=1 // pred_check
      %p22 = pneg %p21
    $region23: #{rnn_forward.1} parent=1 // pred_check_branch
      %24 = sbr.rel (%p22) target = $region25
    $region24: #{rnn_forward.1} parent=1 // pred_region
      %25 = vst [vmem:[#allocation2 + $0x8] sm:$0xff] 0.0
      %26 = vst [vmem:[#allocation2 + $0x10] sm:$0xff] 0.0
    $region25: #{rnn_forward.1} parent=1 // pred_fallthru
      _
    %v27 = vld [vmem:[%s0] sm:$0xff]
    %28 = vst [vmem:[#allocation2] sm:$0xff] %v27
    %v29 = vld [vmem:[#allocation2] sm:$0xff]
    %v30 = vld [vmem:[#allocation2 + $0x8] sm:$0xff]
    %v31 = vld [vmem:[%s1] sm:$0xff]
    %v32 = vld [vmem:[%s1 + $0x8] sm:$0xff]
    %v33 = vld [vmem:[%s1 + $0x10] sm:$0xff]
    %v34 = vld [vmem:[%s1 + $0x18] sm:$0xff]
    %v35 = vld [vmem:[%s1 + $0x20] sm:$0xff]
    %v36 = vld [vmem:[%s1 + $0x28] sm:$0xff]
    %v37 = vld [vmem:[%s1 + $0x30] sm:$0xff]
    %v38 = vld [vmem:[%s1 + $0x38] sm:$0xff]
    %v39 = vld [vmem:[%s1 + $0x40] sm:$0xff]
    %v40 = vld [vmem:[%s1 + $0x48] sm:$0xff]
    %v41 = vld [vmem:[%s1 + $0x50] sm:$0xff]
    %v42 = vld [vmem:[%s1 + $0x58] sm:$0xff]
    %v43 = vld [vmem:[%s1 + $0x60] sm:$0xff]
    %v44 = vld [vmem:[%s1 + $0x68] sm:$0xff]
    %v45 = vld [vmem:[%s1 + $0x70] sm:$0xff]
    %v46 = vld [vmem:[%s1 + $0x78] sm:$0xff]
    %v47 = vld [vmem:[%s1 + $0x80] sm:$0xff]
    %v48 = vld [vmem:[%s1 + $0x88] sm:$0xff]
    %v49 = vld [vmem:[%s1 + $0x90] sm:$0xff]
    %v50 = vld [vmem:[%s1 + $0x98] sm:$0xff]
    %v51 = vld [vmem:[%s1 + $0xa0] sm:$0xff]
    %v52 = vld [vmem:[%s1 + $0xa8] sm:$0xff]
    %v53 = vld [vmem:[%s1 + $0xb0] sm:$0xff]
    %v54 = vld [vmem:[%s1 + $0xb8] sm:$0xff]
    %v55 = vld [vmem:[%s1 + $0xc0] sm:$0xff]
    %v56 = vld [vmem:[%s1 + $0xc8] sm:$0xff]
    %v57 = vld [vmem:[%s1 + $0xd0] sm:$0xff]
    %v58 = vld [vmem:[%s1 + $0xd8] sm:$0xff]
    %v59 = vld [vmem:[%s1 + $0xe0] sm:$0xff]
    %v60 = vld [vmem:[%s1 + $0xe8] sm:$0xff]
    %v61 = vld [vmem:[%s1 + $0xf0] sm:$0xff]
    %v62 = vld [vmem:[%s1 + $0xf8] sm:$0xff]
    %v63 = vld [vmem:[%s2] sm:$0x1]
    %v64 = vlaneseq
    %v65 = vshrl.u32 %v64, 7
    %v66 = vsub.s32 0, %v65
    %v67 = vrot.slane %v63, %v66
    %68 = vmatprep.subr.mxu0 0.0
    %69 = vmatpush1.msra.mxu0 %v31
    %70 = vmatprep.subr.mxu0 0.0
    %71 = vmatpush1.msra.mxu0 %v32
    %72 = vmatprep.subr.mxu0 0.0
    %73 = vmatpush1.msra.mxu0 %v33
    %74 = vmatprep.subr.mxu0 0.0
    %75 = vmatpush1.msra.mxu0 %v34
    %76 = vmatprep.subr.mxu0 0.0
    %77 = vmatpush1.msra.mxu0 %v35
    %78 = vmatprep.subr.mxu0 0.0
    %79 = vmatpush1.msra.mxu0 %v36
    %80 = vmatprep.subr.mxu0 0.0
    %81 = vmatpush1.msra.mxu0 %v37
    %82 = vmatprep.subr.mxu0 0.0
    %83 = vmatpush1.msra.mxu0 %v38
    %84 = vmatprep.subr.mxu0 0.0
    %85 = vmatpush1.msra.mxu0 %v39
    %86 = vmatprep.subr.mxu0 0.0
    %87 = vmatpush1.msra.mxu0 %v40
    %88 = vmatprep.subr.mxu0 0.0
    %89 = vmatpush1.msra.mxu0 %v41
    %90 = vmatprep.subr.mxu0 0.0
    %91 = vmatpush1.msra.mxu0 %v42
    %92 = vmatprep.subr.mxu0 0.0
    %93 = vmatpush1.msra.mxu0 %v43
    %94 = vmatprep.subr.mxu0 0.0
    %95 = vmatpush1.msra.mxu0 %v44
    %96 = vmatprep.subr.mxu0 0.0
    %97 = vmatpush1.msra.mxu0 %v45
    %98 = vmatprep.subr.mxu0 0.0
    %99 = vmatpush1.msra.mxu0 %v46
    %100 = vmatprep.subr.mxu0 0.0
    %101 = vmatpush1.msra.mxu0 %v47
    %102 = vmatprep.subr.mxu0 0.0
    %103 = vmatpush1.msra.mxu0 %v48
    %104 = vmatprep.subr.mxu0 0.0
    %105 = vmatpush1.msra.mxu0 %v49
    %106 = vmatprep.subr.mxu0 0.0
    %107 = vmatpush1.msra.mxu0 %v50
    %108 = vmatprep.subr.mxu0 0.0
    %109 = vmatpush1.msra.mxu0 %v51
    %110 = vmatprep.subr.mxu0 0.0
    %111 = vmatpush1.msra.mxu0 %v52
    %112 = vmatprep.subr.mxu0 0.0
    %113 = vmatpush1.msra.mxu0 %v53
    %114 = vmatprep.subr.mxu0 0.0
    %115 = vmatpush1.msra.mxu0 %v54
    %116 = vmatprep.subr.mxu0 0.0
    %117 = vmatpush1.msra.mxu0 %v55
    %118 = vmatprep.subr.mxu0 0.0
    %119 = vmatpush1.msra.mxu0 %v56
    %120 = vmatprep.subr.mxu0 0.0
    %121 = vmatpush1.msra.mxu0 %v57
    %122 = vmatprep.subr.mxu0 0.0
    %123 = vmatpush1.msra.mxu0 %v58
    %124 = vmatprep.subr.mxu0 0.0
    %125 = vmatpush1.msra.mxu0 %v59
    %126 = vmatprep.subr.mxu0 0.0
    %127 = vmatpush1.msra.mxu0 %v60
    %128 = vmatprep.subr.mxu0 0.0
    %129 = vmatpush1.msra.mxu0 %v61
    %130 = vmatprep.subr.mxu0 0.0
    %131 = vmatpush1.msra.mxu0 %v62
    %132 = vmatprep.mubr.f32.mxu0 %v30
    %133 = vmatmul.mubr.f32.gmra.mrb[0].mxu0 %v29
    %v134 = vpop.f32.mrb[0].mxu0
    %v135 = vadd.f32 %v67, %v134
    %v136 = vpop.f32.mrb[0].mxu0
    %137 = vdwg.mxu0
    %v138 = vtanh.pop %v135
    %139 = vst [vmem:[#allocation2 + $0x8] sm:$0xff] %v138
    %v140 = vld [vmem:[#allocation2 + $0x8] sm:$0xff]
    %v141 = vld [vmem:[#allocation2 + $0x10] sm:$0xff]
    %v142 = vld [vmem:[%s1 + $0x100] sm:$0xff]
    %v143 = vld [vmem:[%s1 + $0x108] sm:$0xff]
    %v144 = vld [vmem:[%s1 + $0x110] sm:$0xff]
    %v145 = vld [vmem:[%s1 + $0x118] sm:$0xff]
    %v146 = vld [vmem:[%s1 + $0x120] sm:$0xff]
    %v147 = vld [vmem:[%s1 + $0x128] sm:$0xff]
    %v148 = vld [vmem:[%s1 + $0x130] sm:$0xff]
    %v149 = vld [vmem:[%s1 + $0x138] sm:$0xff]
    %v150 = vld [vmem:[%s1 + $0x140] sm:$0xff]
    %v151 = vld [vmem:[%s1 + $0x148] sm:$0xff]
    %v152 = vld [vmem:[%s1 + $0x150] sm:$0xff]
    %v153 = vld [vmem:[%s1 + $0x158] sm:$0xff]
    %v154 = vld [vmem:[%s1 + $0x160] sm:$0xff]
    %v155 = vld [vmem:[%s1 + $0x168] sm:$0xff]
    %v156 = vld [vmem:[%s1 + $0x170] sm:$0xff]
    %v157 = vld [vmem:[%s1 + $0x178] sm:$0xff]
    %v158 = vld [vmem:[%s1 + $0x180] sm:$0xff]
    %v159 = vld [vmem:[%s1 + $0x188] sm:$0xff]
    %v160 = vld [vmem:[%s1 + $0x190] sm:$0xff]
    %v161 = vld [vmem:[%s1 + $0x198] sm:$0xff]
    %v162 = vld [vmem:[%s1 + $0x1a0] sm:$0xff]
    %v163 = vld [vmem:[%s1 + $0x1a8] sm:$0xff]
    %v164 = vld [vmem:[%s1 + $0x1b0] sm:$0xff]
    %v165 = vld [vmem:[%s1 + $0x1b8] sm:$0xff]
    %v166 = vld [vmem:[%s1 + $0x1c0] sm:$0xff]
    %v167 = vld [vmem:[%s1 + $0x1c8] sm:$0xff]
    %v168 = vld [vmem:[%s1 + $0x1d0] sm:$0xff]
    %v169 = vld [vmem:[%s1 + $0x1d8] sm:$0xff]
    %v170 = vld [vmem:[%s1 + $0x1e0] sm:$0xff]
    %v171 = vld [vmem:[%s1 + $0x1e8] sm:$0xff]
    %v172 = vld [vmem:[%s1 + $0x1f0] sm:$0xff]
    %v173 = vld [vmem:[%s1 + $0x1f8] sm:$0xff]
    %v174 = vld [vmem:[%s2 + $0x1] sm:$0x1]
    %v175 = vlaneseq
    %v176 = vshrl.u32 %v175, 7
    %v177 = vsub.s32 0, %v176
    %v178 = vrot.slane %v174, %v177
    %179 = vmatprep.subr.mxu0 0.0
    %180 = vmatpush1.msra.mxu0 %v142
    %181 = vmatprep.subr.mxu0 0.0
    %182 = vmatpush1.msra.mxu0 %v143
    %183 = vmatprep.subr.mxu0 0.0
    %184 = vmatpush1.msra.mxu0 %v144
    %185 = vmatprep.subr.mxu0 0.0
    %186 = vmatpush1.msra.mxu0 %v145
    %187 = vmatprep.subr.mxu0 0.0
    %188 = vmatpush1.msra.mxu0 %v146
    %189 = vmatprep.subr.mxu0 0.0
    %190 = vmatpush1.msra.mxu0 %v147
    %191 = vmatprep.subr.mxu0 0.0
    %192 = vmatpush1.msra.mxu0 %v148
    %193 = vmatprep.subr.mxu0 0.0
    %194 = vmatpush1.msra.mxu0 %v149
    %195 = vmatprep.subr.mxu0 0.0
    %196 = vmatpush1.msra.mxu0 %v150
    %197 = vmatprep.subr.mxu0 0.0
    %198 = vmatpush1.msra.mxu0 %v151
    %199 = vmatprep.subr.mxu0 0.0
    %200 = vmatpush1.msra.mxu0 %v152
    %201 = vmatprep.subr.mxu0 0.0
    %202 = vmatpush1.msra.mxu0 %v153
    %203 = vmatprep.subr.mxu0 0.0
    %204 = vmatpush1.msra.mxu0 %v154
    %205 = vmatprep.subr.mxu0 0.0
    %206 = vmatpush1.msra.mxu0 %v155
    %207 = vmatprep.subr.mxu0 0.0
    %208 = vmatpush1.msra.mxu0 %v156
    %209 = vmatprep.subr.mxu0 0.0
    %210 = vmatpush1.msra.mxu0 %v157
    %211 = vmatprep.subr.mxu0 0.0
    %212 = vmatpush1.msra.mxu0 %v158
    %213 = vmatprep.subr.mxu0 0.0
    %214 = vmatpush1.msra.mxu0 %v159
    %215 = vmatprep.subr.mxu0 0.0
    %216 = vmatpush1.msra.mxu0 %v160
    %217 = vmatprep.subr.mxu0 0.0
    %218 = vmatpush1.msra.mxu0 %v161
    %219 = vmatprep.subr.mxu0 0.0
    %220 = vmatpush1.msra.mxu0 %v162
    %221 = vmatprep.subr.mxu0 0.0
    %222 = vmatpush1.msra.mxu0 %v163
    %223 = vmatprep.subr.mxu0 0.0
    %224 = vmatpush1.msra.mxu0 %v164
    %225 = vmatprep.subr.mxu0 0.0
    %226 = vmatpush1.msra.mxu0 %v165
    %227 = vmatprep.subr.mxu0 0.0
    %228 = vmatpush1.msra.mxu0 %v166
    %229 = vmatprep.subr.mxu0 0.0
    %230 = vmatpush1.msra.mxu0 %v167
    %231 = vmatprep.subr.mxu0 0.0
    %232 = vmatpush1.msra.mxu0 %v168
    %233 = vmatprep.subr.mxu0 0.0
    %234 = vmatpush1.msra.mxu0 %v169
    %235 = vmatprep.subr.mxu0 0.0
    %236 = vmatpush1.msra.mxu0 %v170
    %237 = vmatprep.subr.mxu0 0.0
    %238 = vmatpush1.msra.mxu0 %v171
    %239 = vmatprep.subr.mxu0 0.0
    %240 = vmatpush1.msra.mxu0 %v172
    %241 = vmatprep.subr.mxu0 0.0
    %242 = vmatpush1.msra.mxu0 %v173
    %243 = vmatprep.mubr.f32.mxu0 %v141
    %244 = vmatmul.mubr.f32.gmra.mrb[0].mxu0 %v140
    %v245 = vpop.f32.mrb[0].mxu0
    %v246 = vadd.f32 %v178, %v245
    %v247 = vpop.f32.mrb[0].mxu0
    %248 = vdwg.mxu0
    %v249 = vtanh.pop %v246
    %250 = vst [vmem:[#allocation2 + $0x10] sm:$0xff] %v249
    %s251 = scalar_lea.vmem %s0, 8
    %v252 = vld [vmem:[%s251] sm:$0xff]
    %253 = vst [vmem:[#allocation2] sm:$0xff] %v252
    %v254 = vld [vmem:[#allocation2] sm:$0xff]
    %v255 = vld [vmem:[#allocation2 + $0x8] sm:$0xff]
    %v256 = vld [vmem:[%s1] sm:$0xff]
    %v257 = vld [vmem:[%s1 + $0x8] sm:$0xff]
    %v258 = vld [vmem:[%s1 + $0x10] sm:$0xff]
    %v259 = vld [vmem:[%s1 + $0x18] sm:$0xff]
    %v260 = vld [vmem:[%s1 + $0x20] sm:$0xff]
    %v261 = vld [vmem:[%s1 + $0x28] sm:$0xff]
    %v262 = vld [vmem:[%s1 + $0x30] sm:$0xff]
    %v263 = vld [vmem:[%s1 + $0x38] sm:$0xff]
    %v264 = vld [vmem:[%s1 + $0x40] sm:$0xff]
    %v265 = vld [vmem:[%s1 + $0x48] sm:$0xff]
    %v266 = vld [vmem:[%s1 + $0x50] sm:$0xff]
    %v267 = vld [vmem:[%s1 + $0x58] sm:$0xff]
    %v268 = vld [vmem:[%s1 + $0x60] sm:$0xff]
    %v269 = vld [vmem:[%s1 + $0x68] sm:$0xff]
    %v270 = vld [vmem:[%s1 + $0x70] sm:$0xff]
    %v271 = vld [vmem:[%s1 + $0x78] sm:$0xff]
    %v272 = vld [vmem:[%s1 + $0x80] sm:$0xff]
    %v273 = vld [vmem:[%s1 + $0x88] sm:$0xff]
    %v274 = vld [vmem:[%s1 + $0x90] sm:$0xff]
    %v275 = vld [vmem:[%s1 + $0x98] sm:$0xff]
    %v276 = vld [vmem:[%s1 + $0xa0] sm:$0xff]
    %v277 = vld [vmem:[%s1 + $0xa8] sm:$0xff]
    %v278 = vld [vmem:[%s1 + $0xb0] sm:$0xff]
    %v279 = vld [vmem:[%s1 + $0xb8] sm:$0xff]
    %v280 = vld [vmem:[%s1 + $0xc0] sm:$0xff]
    %v281 = vld [vmem:[%s1 + $0xc8] sm:$0xff]
    %v282 = vld [vmem:[%s1 + $0xd0] sm:$0xff]
    %v283 = vld [vmem:[%s1 + $0xd8] sm:$0xff]
    %v284 = vld [vmem:[%s1 + $0xe0] sm:$0xff]
    %v285 = vld [vmem:[%s1 + $0xe8] sm:$0xff]
    %v286 = vld [vmem:[%s1 + $0xf0] sm:$0xff]
    %v287 = vld [vmem:[%s1 + $0xf8] sm:$0xff]
    %v288 = vld [vmem:[%s2] sm:$0x1]
    %v289 = vlaneseq
    %v290 = vshrl.u32 %v289, 7
    %v291 = vsub.s32 0, %v290
    %v292 = vrot.slane %v288, %v291
    %293 = vmatprep.subr.mxu0 0.0
    %294 = vmatpush1.msra.mxu0 %v256
    %295 = vmatprep.subr.mxu0 0.0
    %296 = vmatpush1.msra.mxu0 %v257
    %297 = vmatprep.subr.mxu0 0.0
    %298 = vmatpush1.msra.mxu0 %v258
    %299 = vmatprep.subr.mxu0 0.0
    %300 = vmatpush1.msra.mxu0 %v259
    %301 = vmatprep.subr.mxu0 0.0
    %302 = vmatpush1.msra.mxu0 %v260
    %303 = vmatprep.subr.mxu0 0.0
    %304 = vmatpush1.msra.mxu0 %v261
    %305 = vmatprep.subr.mxu0 0.0
    %306 = vmatpush1.msra.mxu0 %v262
    %307 = vmatprep.subr.mxu0 0.0
    %308 = vmatpush1.msra.mxu0 %v263
    %309 = vmatprep.subr.mxu0 0.0
    %310 = vmatpush1.msra.mxu0 %v264
    %311 = vmatprep.subr.mxu0 0.0
    %312 = vmatpush1.msra.mxu0 %v265
    %313 = vmatprep.subr.mxu0 0.0
    %314 = vmatpush1.msra.mxu0 %v266
    %315 = vmatprep.subr.mxu0 0.0
    %316 = vmatpush1.msra.mxu0 %v267
    %317 = vmatprep.subr.mxu0 0.0
    %318 = vmatpush1.msra.mxu0 %v268
    %319 = vmatprep.subr.mxu0 0.0
    %320 = vmatpush1.msra.mxu0 %v269
    %321 = vmatprep.subr.mxu0 0.0
    %322 = vmatpush1.msra.mxu0 %v270
    %323 = vmatprep.subr.mxu0 0.0
    %324 = vmatpush1.msra.mxu0 %v271
    %325 = vmatprep.subr.mxu0 0.0
    %326 = vmatpush1.msra.mxu0 %v272
    %327 = vmatprep.subr.mxu0 0.0
    %328 = vmatpush1.msra.mxu0 %v273
    %329 = vmatprep.subr.mxu0 0.0
    %330 = vmatpush1.msra.mxu0 %v274
    %331 = vmatprep.subr.mxu0 0.0
    %332 = vmatpush1.msra.mxu0 %v275
    %333 = vmatprep.subr.mxu0 0.0
    %334 = vmatpush1.msra.mxu0 %v276
    %335 = vmatprep.subr.mxu0 0.0
    %336 = vmatpush1.msra.mxu0 %v277
    %337 = vmatprep.subr.mxu0 0.0
    %338 = vmatpush1.msra.mxu0 %v278
    %339 = vmatprep.subr.mxu0 0.0
    %340 = vmatpush1.msra.mxu0 %v279
    %341 = vmatprep.subr.mxu0 0.0
    %342 = vmatpush1.msra.mxu0 %v280
    %343 = vmatprep.subr.mxu0 0.0
    %344 = vmatpush1.msra.mxu0 %v281
    %345 = vmatprep.subr.mxu0 0.0
    %346 = vmatpush1.msra.mxu0 %v282
    %347 = vmatprep.subr.mxu0 0.0
    %348 = vmatpush1.msra.mxu0 %v283
    %349 = vmatprep.subr.mxu0 0.0
    %350 = vmatpush1.msra.mxu0 %v284
    %351 = vmatprep.subr.mxu0 0.0
    %352 = vmatpush1.msra.mxu0 %v285
    %353 = vmatprep.subr.mxu0 0.0
    %354 = vmatpush1.msra.mxu0 %v286
    %355 = vmatprep.subr.mxu0 0.0
    %356 = vmatpush1.msra.mxu0 %v287
    %357 = vmatprep.mubr.f32.mxu0 %v255
    %358 = vmatmul.mubr.f32.gmra.mrb[0].mxu0 %v254
    %v359 = vpop.f32.mrb[0].mxu0
    %v360 = vadd.f32 %v292, %v359
    %v361 = vpop.f32.mrb[0].mxu0
    %362 = vdwg.mxu0
    %v363 = vtanh.pop %v360
    %364 = vst [vmem:[#allocation2 + $0x8] sm:$0xff] %v363
    %v365 = vld [vmem:[#allocation2 + $0x8] sm:$0xff]
    %v366 = vld [vmem:[#allocation2 + $0x10] sm:$0xff]
    %v367 = vld [vmem:[%s1 + $0x100] sm:$0xff]
    %v368 = vld [vmem:[%s1 + $0x108] sm:$0xff]
    %v369 = vld [vmem:[%s1 + $0x110] sm:$0xff]
    %v370 = vld [vmem:[%s1 + $0x118] sm:$0xff]
    %v371 = vld [vmem:[%s1 + $0x120] sm:$0xff]
    %v372 = vld [vmem:[%s1 + $0x128] sm:$0xff]
    %v373 = vld [vmem:[%s1 + $0x130] sm:$0xff]
    %v374 = vld [vmem:[%s1 + $0x138] sm:$0xff]
    %v375 = vld [vmem:[%s1 + $0x140] sm:$0xff]
    %v376 = vld [vmem:[%s1 + $0x148] sm:$0xff]
    %v377 = vld [vmem:[%s1 + $0x150] sm:$0xff]
    %v378 = vld [vmem:[%s1 + $0x158] sm:$0xff]
    %v379 = vld [vmem:[%s1 + $0x160] sm:$0xff]
    %v380 = vld [vmem:[%s1 + $0x168] sm:$0xff]
    %v381 = vld [vmem:[%s1 + $0x170] sm:$0xff]
    %v382 = vld [vmem:[%s1 + $0x178] sm:$0xff]
    %v383 = vld [vmem:[%s1 + $0x180] sm:$0xff]
    %v384 = vld [vmem:[%s1 + $0x188] sm:$0xff]
    %v385 = vld [vmem:[%s1 + $0x190] sm:$0xff]
    %v386 = vld [vmem:[%s1 + $0x198] sm:$0xff]
    %v387 = vld [vmem:[%s1 + $0x1a0] sm:$0xff]
    %v388 = vld [vmem:[%s1 + $0x1a8] sm:$0xff]
    %v389 = vld [vmem:[%s1 + $0x1b0] sm:$0xff]
    %v390 = vld [vmem:[%s1 + $0x1b8] sm:$0xff]
    %v391 = vld [vmem:[%s1 + $0x1c0] sm:$0xff]
    %v392 = vld [vmem:[%s1 + $0x1c8] sm:$0xff]
    %v393 = vld [vmem:[%s1 + $0x1d0] sm:$0xff]
    %v394 = vld [vmem:[%s1 + $0x1d8] sm:$0xff]
    %v395 = vld [vmem:[%s1 + $0x1e0] sm:$0xff]
    %v396 = vld [vmem:[%s1 + $0x1e8] sm:$0xff]
    %v397 = vld [vmem:[%s1 + $0x1f0] sm:$0xff]
    %v398 = vld [vmem:[%s1 + $0x1f8] sm:$0xff]
    %v399 = vld [vmem:[%s2 + $0x1] sm:$0x1]
    %v400 = vlaneseq
    %v401 = vshrl.u32 %v400, 7
    %v402 = vsub.s32 0, %v401
    %v403 = vrot.slane %v399, %v402
    %404 = vmatprep.subr.mxu0 0.0
    %405 = vmatpush1.msra.mxu0 %v367
    %406 = vmatprep.subr.mxu0 0.0
    %407 = vmatpush1.msra.mxu0 %v368
    %408 = vmatprep.subr.mxu0 0.0
    %409 = vmatpush1.msra.mxu0 %v369
    %410 = vmatprep.subr.mxu0 0.0
    %411 = vmatpush1.msra.mxu0 %v370
    %412 = vmatprep.subr.mxu0 0.0
    %413 = vmatpush1.msra.mxu0 %v371
    %414 = vmatprep.subr.mxu0 0.0
    %415 = vmatpush1.msra.mxu0 %v372
    %416 = vmatprep.subr.mxu0 0.0
    %417 = vmatpush1.msra.mxu0 %v373
    %418 = vmatprep.subr.mxu0 0.0
    %419 = vmatpush1.msra.mxu0 %v374
    %420 = vmatprep.subr.mxu0 0.0
    %421 = vmatpush1.msra.mxu0 %v375
    %422 = vmatprep.subr.mxu0 0.0
    %423 = vmatpush1.msra.mxu0 %v376
    %424 = vmatprep.subr.mxu0 0.0
    %425 = vmatpush1.msra.mxu0 %v377
    %426 = vmatprep.subr.mxu0 0.0
    %427 = vmatpush1.msra.mxu0 %v378
    %428 = vmatprep.subr.mxu0 0.0
    %429 = vmatpush1.msra.mxu0 %v379
    %430 = vmatprep.subr.mxu0 0.0
    %431 = vmatpush1.msra.mxu0 %v380
    %432 = vmatprep.subr.mxu0 0.0
    %433 = vmatpush1.msra.mxu0 %v381
    %434 = vmatprep.subr.mxu0 0.0
    %435 = vmatpush1.msra.mxu0 %v382
    %436 = vmatprep.subr.mxu0 0.0
    %437 = vmatpush1.msra.mxu0 %v383
    %438 = vmatprep.subr.mxu0 0.0
    %439 = vmatpush1.msra.mxu0 %v384
    %440 = vmatprep.subr.mxu0 0.0
    %441 = vmatpush1.msra.mxu0 %v385
    %442 = vmatprep.subr.mxu0 0.0
    %443 = vmatpush1.msra.mxu0 %v386
    %444 = vmatprep.subr.mxu0 0.0
    %445 = vmatpush1.msra.mxu0 %v387
    %446 = vmatprep.subr.mxu0 0.0
    %447 = vmatpush1.msra.mxu0 %v388
    %448 = vmatprep.subr.mxu0 0.0
    %449 = vmatpush1.msra.mxu0 %v389
    %450 = vmatprep.subr.mxu0 0.0
    %451 = vmatpush1.msra.mxu0 %v390
    %452 = vmatprep.subr.mxu0 0.0
    %453 = vmatpush1.msra.mxu0 %v391
    %454 = vmatprep.subr.mxu0 0.0
    %455 = vmatpush1.msra.mxu0 %v392
    %456 = vmatprep.subr.mxu0 0.0
    %457 = vmatpush1.msra.mxu0 %v393
    %458 = vmatprep.subr.mxu0 0.0
    %459 = vmatpush1.msra.mxu0 %v394
    %460 = vmatprep.subr.mxu0 0.0
    %461 = vmatpush1.msra.mxu0 %v395
    %462 = vmatprep.subr.mxu0 0.0
    %463 = vmatpush1.msra.mxu0 %v396
    %464 = vmatprep.subr.mxu0 0.0
    %465 = vmatpush1.msra.mxu0 %v397
    %466 = vmatprep.subr.mxu0 0.0
    %467 = vmatpush1.msra.mxu0 %v398
    %468 = vmatprep.mubr.f32.mxu0 %v366
    %469 = vmatmul.mubr.f32.gmra.mrb[0].mxu0 %v365
    %v470 = vpop.f32.mrb[0].mxu0
    %v471 = vadd.f32 %v403, %v470
    %v472 = vpop.f32.mrb[0].mxu0
    %473 = vdwg.mxu0
    %v474 = vtanh.pop %v471
    %475 = vst [vmem:[#allocation2 + $0x10] sm:$0xff] %v474
    %s476 = scalar_lea.vmem %s0, 16
    %v477 = vld [vmem:[%s476] sm:$0xff]
    %478 = vst [vmem:[#allocation2] sm:$0xff] %v477
    %v479 = vld [vmem:[#allocation2] sm:$0xff]
    %v480 = vld [vmem:[#allocation2 + $0x8] sm:$0xff]
    %v481 = vld [vmem:[%s1] sm:$0xff]
    %v482 = vld [vmem:[%s1 + $0x8] sm:$0xff]
    %v483 = vld [vmem:[%s1 + $0x10] sm:$0xff]
    %v484 = vld [vmem:[%s1 + $0x18] sm:$0xff]
    %v485 = vld [vmem:[%s1 + $0x20] sm:$0xff]
    %v486 = vld [vmem:[%s1 + $0x28] sm:$0xff]
    %v487 = vld [vmem:[%s1 + $0x30] sm:$0xff]
    %v488 = vld [vmem:[%s1 + $0x38] sm:$0xff]
    %v489 = vld [vmem:[%s1 + $0x40] sm:$0xff]
    %v490 = vld [vmem:[%s1 + $0x48] sm:$0xff]
    %v491 = vld [vmem:[%s1 + $0x50] sm:$0xff]
    %v492 = vld [vmem:[%s1 + $0x58] sm:$0xff]
    %v493 = vld [vmem:[%s1 + $0x60] sm:$0xff]
    %v494 = vld [vmem:[%s1 + $0x68] sm:$0xff]
    %v495 = vld [vmem:[%s1 + $0x70] sm:$0xff]
    %v496 = vld [vmem:[%s1 + $0x78] sm:$0xff]
    %v497 = vld [vmem:[%s1 + $0x80] sm:$0xff]
    %v498 = vld [vmem:[%s1 + $0x88] sm:$0xff]
    %v499 = vld [vmem:[%s1 + $0x90] sm:$0xff]
    %v500 = vld [vmem:[%s1 + $0x98] sm:$0xff]
    %v501 = vld [vmem:[%s1 + $0xa0] sm:$0xff]
    %v502 = vld [vmem:[%s1 + $0xa8] sm:$0xff]
    %v503 = vld [vmem:[%s1 + $0xb0] sm:$0xff]
    %v504 = vld [vmem:[%s1 + $0xb8] sm:$0xff]
    %v505 = vld [vmem:[%s1 + $0xc0] sm:$0xff]
    %v506 = vld [vmem:[%s1 + $0xc8] sm:$0xff]
    %v507 = vld [vmem:[%s1 + $0xd0] sm:$0xff]
    %v508 = vld [vmem:[%s1 + $0xd8] sm:$0xff]
    %v509 = vld [vmem:[%s1 + $0xe0] sm:$0xff]
    %v510 = vld [vmem:[%s1 + $0xe8] sm:$0xff]
    %v511 = vld [vmem:[%s1 + $0xf0] sm:$0xff]
    %v512 = vld [vmem:[%s1 + $0xf8] sm:$0xff]
    %v513 = vld [vmem:[%s2] sm:$0x1]
    %v514 = vlaneseq
    %v515 = vshrl.u32 %v514, 7
    %v516 = vsub.s32 0, %v515
    %v517 = vrot.slane %v513, %v516
    %518 = vmatprep.subr.mxu0 0.0
    %519 = vmatpush1.msra.mxu0 %v481
    %520 = vmatprep.subr.mxu0 0.0
    %521 = vmatpush1.msra.mxu0 %v482
    %522 = vmatprep.subr.mxu0 0.0
    %523 = vmatpush1.msra.mxu0 %v483
    %524 = vmatprep.subr.mxu0 0.0
    %525 = vmatpush1.msra.mxu0 %v484
    %526 = vmatprep.subr.mxu0 0.0
    %527 = vmatpush1.msra.mxu0 %v485
    %528 = vmatprep.subr.mxu0 0.0
    %529 = vmatpush1.msra.mxu0 %v486
    %530 = vmatprep.subr.mxu0 0.0
    %531 = vmatpush1.msra.mxu0 %v487
    %532 = vmatprep.subr.mxu0 0.0
    %533 = vmatpush1.msra.mxu0 %v488
    %534 = vmatprep.subr.mxu0 0.0
    %535 = vmatpush1.msra.mxu0 %v489
    %536 = vmatprep.subr.mxu0 0.0
    %537 = vmatpush1.msra.mxu0 %v490
    %538 = vmatprep.subr.mxu0 0.0
    %539 = vmatpush1.msra.mxu0 %v491
    %540 = vmatprep.subr.mxu0 0.0
    %541 = vmatpush1.msra.mxu0 %v492
    %542 = vmatprep.subr.mxu0 0.0
    %543 = vmatpush1.msra.mxu0 %v493
    %544 = vmatprep.subr.mxu0 0.0
    %545 = vmatpush1.msra.mxu0 %v494
    %546 = vmatprep.subr.mxu0 0.0
    %547 = vmatpush1.msra.mxu0 %v495
    %548 = vmatprep.subr.mxu0 0.0
    %549 = vmatpush1.msra.mxu0 %v496
    %550 = vmatprep.subr.mxu0 0.0
    %551 = vmatpush1.msra.mxu0 %v497
    %552 = vmatprep.subr.mxu0 0.0
    %553 = vmatpush1.msra.mxu0 %v498
    %554 = vmatprep.subr.mxu0 0.0
    %555 = vmatpush1.msra.mxu0 %v499
    %556 = vmatprep.subr.mxu0 0.0
    %557 = vmatpush1.msra.mxu0 %v500
    %558 = vmatprep.subr.mxu0 0.0
    %559 = vmatpush1.msra.mxu0 %v501
    %560 = vmatprep.subr.mxu0 0.0
    %561 = vmatpush1.msra.mxu0 %v502
    %562 = vmatprep.subr.mxu0 0.0
    %563 = vmatpush1.msra.mxu0 %v503
    %564 = vmatprep.subr.mxu0 0.0
    %565 = vmatpush1.msra.mxu0 %v504
    %566 = vmatprep.subr.mxu0 0.0
    %567 = vmatpush1.msra.mxu0 %v505
    %568 = vmatprep.subr.mxu0 0.0
    %569 = vmatpush1.msra.mxu0 %v506
    %570 = vmatprep.subr.mxu0 0.0
    %571 = vmatpush1.msra.mxu0 %v507
    %572 = vmatprep.subr.mxu0 0.0
    %573 = vmatpush1.msra.mxu0 %v508
    %574 = vmatprep.subr.mxu0 0.0
    %575 = vmatpush1.msra.mxu0 %v509
    %576 = vmatprep.subr.mxu0 0.0
    %577 = vmatpush1.msra.mxu0 %v510
    %578 = vmatprep.subr.mxu0 0.0
    %579 = vmatpush1.msra.mxu0 %v511
    %580 = vmatprep.subr.mxu0 0.0
    %581 = vmatpush1.msra.mxu0 %v512
    %582 = vmatprep.mubr.f32.mxu0 %v480
    %583 = vmatmul.mubr.f32.gmra.mrb[0].mxu0 %v479
    %v584 = vpop.f32.mrb[0].mxu0
    %v585 = vadd.f32 %v517, %v584
    %v586 = vpop.f32.mrb[0].mxu0
    %587 = vdwg.mxu0
    %v588 = vtanh.pop %v585
    %589 = vst [vmem:[#allocation2 + $0x8] sm:$0xff] %v588
    %v590 = vld [vmem:[#allocation2 + $0x8] sm:$0xff]
    %v591 = vld [vmem:[#allocation2 + $0x10] sm:$0xff]
    %v592 = vld [vmem:[%s1 + $0x100] sm:$0xff]
    %v593 = vld [vmem:[%s1 + $0x108] sm:$0xff]
    %v594 = vld [vmem:[%s1 + $0x110] sm:$0xff]
    %v595 = vld [vmem:[%s1 + $0x118] sm:$0xff]
    %v596 = vld [vmem:[%s1 + $0x120] sm:$0xff]
    %v597 = vld [vmem:[%s1 + $0x128] sm:$0xff]
    %v598 = vld [vmem:[%s1 + $0x130] sm:$0xff]
    %v599 = vld [vmem:[%s1 + $0x138] sm:$0xff]
    %v600 = vld [vmem:[%s1 + $0x140] sm:$0xff]
    %v601 = vld [vmem:[%s1 + $0x148] sm:$0xff]
    %v602 = vld [vmem:[%s1 + $0x150] sm:$0xff]
    %v603 = vld [vmem:[%s1 + $0x158] sm:$0xff]
    %v604 = vld [vmem:[%s1 + $0x160] sm:$0xff]
    %v605 = vld [vmem:[%s1 + $0x168] sm:$0xff]
    %v606 = vld [vmem:[%s1 + $0x170] sm:$0xff]
    %v607 = vld [vmem:[%s1 + $0x178] sm:$0xff]
    %v608 = vld [vmem:[%s1 + $0x180] sm:$0xff]
    %v609 = vld [vmem:[%s1 + $0x188] sm:$0xff]
    %v610 = vld [vmem:[%s1 + $0x190] sm:$0xff]
    %v611 = vld [vmem:[%s1 + $0x198] sm:$0xff]
    %v612 = vld [vmem:[%s1 + $0x1a0] sm:$0xff]
    %v613 = vld [vmem:[%s1 + $0x1a8] sm:$0xff]
    %v614 = vld [vmem:[%s1 + $0x1b0] sm:$0xff]
    %v615 = vld [vmem:[%s1 + $0x1b8] sm:$0xff]
    %v616 = vld [vmem:[%s1 + $0x1c0] sm:$0xff]
    %v617 = vld [vmem:[%s1 + $0x1c8] sm:$0xff]
    %v618 = vld [vmem:[%s1 + $0x1d0] sm:$0xff]
    %v619 = vld [vmem:[%s1 + $0x1d8] sm:$0xff]
    %v620 = vld [vmem:[%s1 + $0x1e0] sm:$0xff]
    %v621 = vld [vmem:[%s1 + $0x1e8] sm:$0xff]
    %v622 = vld [vmem:[%s1 + $0x1f0] sm:$0xff]
    %v623 = vld [vmem:[%s1 + $0x1f8] sm:$0xff]
    %v624 = vld [vmem:[%s2 + $0x1] sm:$0x1]
    %v625 = vlaneseq
    %v626 = vshrl.u32 %v625, 7
    %v627 = vsub.s32 0, %v626
    %v628 = vrot.slane %v624, %v627
    %629 = vmatprep.subr.mxu0 0.0
    %630 = vmatpush1.msra.mxu0 %v592
    %631 = vmatprep.subr.mxu0 0.0
    %632 = vmatpush1.msra.mxu0 %v593
    %633 = vmatprep.subr.mxu0 0.0
    %634 = vmatpush1.msra.mxu0 %v594
    %635 = vmatprep.subr.mxu0 0.0
    %636 = vmatpush1.msra.mxu0 %v595
    %637 = vmatprep.subr.mxu0 0.0
    %638 = vmatpush1.msra.mxu0 %v596
    %639 = vmatprep.subr.mxu0 0.0
    %640 = vmatpush1.msra.mxu0 %v597
    %641 = vmatprep.subr.mxu0 0.0
    %642 = vmatpush1.msra.mxu0 %v598
    %643 = vmatprep.subr.mxu0 0.0
    %644 = vmatpush1.msra.mxu0 %v599
    %645 = vmatprep.subr.mxu0 0.0
    %646 = vmatpush1.msra.mxu0 %v600
    %647 = vmatprep.subr.mxu0 0.0
    %648 = vmatpush1.msra.mxu0 %v601
    %649 = vmatprep.subr.mxu0 0.0
    %650 = vmatpush1.msra.mxu0 %v602
    %651 = vmatprep.subr.mxu0 0.0
    %652 = vmatpush1.msra.mxu0 %v603
    %653 = vmatprep.subr.mxu0 0.0
    %654 = vmatpush1.msra.mxu0 %v604
    %655 = vmatprep.subr.mxu0 0.0
    %656 = vmatpush1.msra.mxu0 %v605
    %657 = vmatprep.subr.mxu0 0.0
    %658 = vmatpush1.msra.mxu0 %v606
    %659 = vmatprep.subr.mxu0 0.0
    %660 = vmatpush1.msra.mxu0 %v607
    %661 = vmatprep.subr.mxu0 0.0
    %662 = vmatpush1.msra.mxu0 %v608
    %663 = vmatprep.subr.mxu0 0.0
    %664 = vmatpush1.msra.mxu0 %v609
    %665 = vmatprep.subr.mxu0 0.0
    %666 = vmatpush1.msra.mxu0 %v610
    %667 = vmatprep.subr.mxu0 0.0
    %668 = vmatpush1.msra.mxu0 %v611
    %669 = vmatprep.subr.mxu0 0.0
    %670 = vmatpush1.msra.mxu0 %v612
    %671 = vmatprep.subr.mxu0 0.0
    %672 = vmatpush1.msra.mxu0 %v613
    %673 = vmatprep.subr.mxu0 0.0
    %674 = vmatpush1.msra.mxu0 %v614
    %675 = vmatprep.subr.mxu0 0.0
    %676 = vmatpush1.msra.mxu0 %v615
    %677 = vmatprep.subr.mxu0 0.0
    %678 = vmatpush1.msra.mxu0 %v616
    %679 = vmatprep.subr.mxu0 0.0
    %680 = vmatpush1.msra.mxu0 %v617
    %681 = vmatprep.subr.mxu0 0.0
    %682 = vmatpush1.msra.mxu0 %v618
    %683 = vmatprep.subr.mxu0 0.0
    %684 = vmatpush1.msra.mxu0 %v619
    %685 = vmatprep.subr.mxu0 0.0
    %686 = vmatpush1.msra.mxu0 %v620
    %687 = vmatprep.subr.mxu0 0.0
    %688 = vmatpush1.msra.mxu0 %v621
    %689 = vmatprep.subr.mxu0 0.0
    %690 = vmatpush1.msra.mxu0 %v622
    %691 = vmatprep.subr.mxu0 0.0
    %692 = vmatpush1.msra.mxu0 %v623
    %693 = vmatprep.mubr.f32.mxu0 %v591
    %694 = vmatmul.mubr.f32.gmra.mrb[0].mxu0 %v590
    %v695 = vpop.f32.mrb[0].mxu0
    %v696 = vadd.f32 %v628, %v695
    %v697 = vpop.f32.mrb[0].mxu0
    %698 = vdwg.mxu0
    %v699 = vtanh.pop %v696
    %700 = vst [vmem:[#allocation2 + $0x10] sm:$0xff] %v699
    %s701 = scalar_lea.vmem %s0, 24
    %v702 = vld [vmem:[%s701] sm:$0xff]
    %703 = vst [vmem:[#allocation2] sm:$0xff] %v702
    %v704 = vld [vmem:[#allocation2] sm:$0xff]
    %v705 = vld [vmem:[#allocation2 + $0x8] sm:$0xff]
    %v706 = vld [vmem:[%s1] sm:$0xff]
    %v707 = vld [vmem:[%s1 + $0x8] sm:$0xff]
    %v708 = vld [vmem:[%s1 + $0x10] sm:$0xff]
    %v709 = vld [vmem:[%s1 + $0x18] sm:$0xff]
    %v710 = vld [vmem:[%s1 + $0x20] sm:$0xff]
    %v711 = vld [vmem:[%s1 + $0x28] sm:$0xff]
    %v712 = vld [vmem:[%s1 + $0x30] sm:$0xff]
    %v713 = vld [vmem:[%s1 + $0x38] sm:$0xff]
    %v714 = vld [vmem:[%s1 + $0x40] sm:$0xff]
    %v715 = vld [vmem:[%s1 + $0x48] sm:$0xff]
    %v716 = vld [vmem:[%s1 + $0x50] sm:$0xff]
    %v717 = vld [vmem:[%s1 + $0x58] sm:$0xff]
    %v718 = vld [vmem:[%s1 + $0x60] sm:$0xff]
    %v719 = vld [vmem:[%s1 + $0x68] sm:$0xff]
    %v720 = vld [vmem:[%s1 + $0x70] sm:$0xff]
    %v721 = vld [vmem:[%s1 + $0x78] sm:$0xff]
    %v722 = vld [vmem:[%s1 + $0x80] sm:$0xff]
    %v723 = vld [vmem:[%s1 + $0x88] sm:$0xff]
    %v724 = vld [vmem:[%s1 + $0x90] sm:$0xff]
    %v725 = vld [vmem:[%s1 + $0x98] sm:$0xff]
    %v726 = vld [vmem:[%s1 + $0xa0] sm:$0xff]
    %v727 = vld [vmem:[%s1 + $0xa8] sm:$0xff]
    %v728 = vld [vmem:[%s1 + $0xb0] sm:$0xff]
    %v729 = vld [vmem:[%s1 + $0xb8] sm:$0xff]
    %v730 = vld [vmem:[%s1 + $0xc0] sm:$0xff]
    %v731 = vld [vmem:[%s1 + $0xc8] sm:$0xff]
    %v732 = vld [vmem:[%s1 + $0xd0] sm:$0xff]
    %v733 = vld [vmem:[%s1 + $0xd8] sm:$0xff]
    %v734 = vld [vmem:[%s1 + $0xe0] sm:$0xff]
    %v735 = vld [vmem:[%s1 + $0xe8] sm:$0xff]
    %v736 = vld [vmem:[%s1 + $0xf0] sm:$0xff]
    %v737 = vld [vmem:[%s1 + $0xf8] sm:$0xff]
    %v738 = vld [vmem:[%s2] sm:$0x1]
    %v739 = vlaneseq
    %v740 = vshrl.u32 %v739, 7
    %v741 = vsub.s32 0, %v740
    %v742 = vrot.slane %v738, %v741
    %743 = vmatprep.subr.mxu0 0.0
    %744 = vmatpush1.msra.mxu0 %v706
    %745 = vmatprep.subr.mxu0 0.0
    %746 = vmatpush1.msra.mxu0 %v707
    %747 = vmatprep.subr.mxu0 0.0
    %748 = vmatpush1.msra.mxu0 %v708
    %749 = vmatprep.subr.mxu0 0.0
    %750 = vmatpush1.msra.mxu0 %v709
    %751 = vmatprep.subr.mxu0 0.0
    %752 = vmatpush1.msra.mxu0 %v710
    %753 = vmatprep.subr.mxu0 0.0
    %754 = vmatpush1.msra.mxu0 %v711
    %755 = vmatprep.subr.mxu0 0.0
    %756 = vmatpush1.msra.mxu0 %v712
    %757 = vmatprep.subr.mxu0 0.0
    %758 = vmatpush1.msra.mxu0 %v713
    %759 = vmatprep.subr.mxu0 0.0
    %760 = vmatpush1.msra.mxu0 %v714
    %761 = vmatprep.subr.mxu0 0.0
    %762 = vmatpush1.msra.mxu0 %v715
    %763 = vmatprep.subr.mxu0 0.0
    %764 = vmatpush1.msra.mxu0 %v716
    %765 = vmatprep.subr.mxu0 0.0
    %766 = vmatpush1.msra.mxu0 %v717
    %767 = vmatprep.subr.mxu0 0.0
    %768 = vmatpush1.msra.mxu0 %v718
    %769 = vmatprep.subr.mxu0 0.0
    %770 = vmatpush1.msra.mxu0 %v719
    %771 = vmatprep.subr.mxu0 0.0
    %772 = vmatpush1.msra.mxu0 %v720
    %773 = vmatprep.subr.mxu0 0.0
    %774 = vmatpush1.msra.mxu0 %v721
    %775 = vmatprep.subr.mxu0 0.0
    %776 = vmatpush1.msra.mxu0 %v722
    %777 = vmatprep.subr.mxu0 0.0
    %778 = vmatpush1.msra.mxu0 %v723
    %779 = vmatprep.subr.mxu0 0.0
    %780 = vmatpush1.msra.mxu0 %v724
    %781 = vmatprep.subr.mxu0 0.0
    %782 = vmatpush1.msra.mxu0 %v725
    %783 = vmatprep.subr.mxu0 0.0
    %784 = vmatpush1.msra.mxu0 %v726
    %785 = vmatprep.subr.mxu0 0.0
    %786 = vmatpush1.msra.mxu0 %v727
    %787 = vmatprep.subr.mxu0 0.0
    %788 = vmatpush1.msra.mxu0 %v728
    %789 = vmatprep.subr.mxu0 0.0
    %790 = vmatpush1.msra.mxu0 %v729
    %791 = vmatprep.subr.mxu0 0.0
    %792 = vmatpush1.msra.mxu0 %v730
    %793 = vmatprep.subr.mxu0 0.0
    %794 = vmatpush1.msra.mxu0 %v731
    %795 = vmatprep.subr.mxu0 0.0
    %796 = vmatpush1.msra.mxu0 %v732
    %797 = vmatprep.subr.mxu0 0.0
    %798 = vmatpush1.msra.mxu0 %v733
    %799 = vmatprep.subr.mxu0 0.0
    %800 = vmatpush1.msra.mxu0 %v734
    %801 = vmatprep.subr.mxu0 0.0
    %802 = vmatpush1.msra.mxu0 %v735
    %803 = vmatprep.subr.mxu0 0.0
    %804 = vmatpush1.msra.mxu0 %v736
    %805 = vmatprep.subr.mxu0 0.0
    %806 = vmatpush1.msra.mxu0 %v737
    %807 = vmatprep.mubr.f32.mxu0 %v705
    %808 = vmatmul.mubr.f32.gmra.mrb[0].mxu0 %v704
    %v809 = vpop.f32.mrb[0].mxu0
    %v810 = vadd.f32 %v742, %v809
    %v811 = vpop.f32.mrb[0].mxu0
    %812 = vdwg.mxu0
    %v813 = vtanh.pop %v810
    %814 = vst [vmem:[#allocation2 + $0x8] sm:$0xff] %v813
    %v815 = vld [vmem:[#allocation2 + $0x8] sm:$0xff]
    %v816 = vld [vmem:[#allocation2 + $0x10] sm:$0xff]
    %v817 = vld [vmem:[%s1 + $0x100] sm:$0xff]
    %v818 = vld [vmem:[%s1 + $0x108] sm:$0xff]
    %v819 = vld [vmem:[%s1 + $0x110] sm:$0xff]
    %v820 = vld [vmem:[%s1 + $0x118] sm:$0xff]
    %v821 = vld [vmem:[%s1 + $0x120] sm:$0xff]
    %v822 = vld [vmem:[%s1 + $0x128] sm:$0xff]
    %v823 = vld [vmem:[%s1 + $0x130] sm:$0xff]
    %v824 = vld [vmem:[%s1 + $0x138] sm:$0xff]
    %v825 = vld [vmem:[%s1 + $0x140] sm:$0xff]
    %v826 = vld [vmem:[%s1 + $0x148] sm:$0xff]
    %v827 = vld [vmem:[%s1 + $0x150] sm:$0xff]
    %v828 = vld [vmem:[%s1 + $0x158] sm:$0xff]
    %v829 = vld [vmem:[%s1 + $0x160] sm:$0xff]
    %v830 = vld [vmem:[%s1 + $0x168] sm:$0xff]
    %v831 = vld [vmem:[%s1 + $0x170] sm:$0xff]
    %v832 = vld [vmem:[%s1 + $0x178] sm:$0xff]
    %v833 = vld [vmem:[%s1 + $0x180] sm:$0xff]
    %v834 = vld [vmem:[%s1 + $0x188] sm:$0xff]
    %v835 = vld [vmem:[%s1 + $0x190] sm:$0xff]
    %v836 = vld [vmem:[%s1 + $0x198] sm:$0xff]
    %v837 = vld [vmem:[%s1 + $0x1a0] sm:$0xff]
    %v838 = vld [vmem:[%s1 + $0x1a8] sm:$0xff]
    %v839 = vld [vmem:[%s1 + $0x1b0] sm:$0xff]
    %v840 = vld [vmem:[%s1 + $0x1b8] sm:$0xff]
    %v841 = vld [vmem:[%s1 + $0x1c0] sm:$0xff]
    %v842 = vld [vmem:[%s1 + $0x1c8] sm:$0xff]
    %v843 = vld [vmem:[%s1 + $0x1d0] sm:$0xff]
    %v844 = vld [vmem:[%s1 + $0x1d8] sm:$0xff]
    %v845 = vld [vmem:[%s1 + $0x1e0] sm:$0xff]
    %v846 = vld [vmem:[%s1 + $0x1e8] sm:$0xff]
    %v847 = vld [vmem:[%s1 + $0x1f0] sm:$0xff]
    %v848 = vld [vmem:[%s1 + $0x1f8] sm:$0xff]
    %v849 = vld [vmem:[%s2 + $0x1] sm:$0x1]
    %v850 = vlaneseq
    %v851 = vshrl.u32 %v850, 7
    %v852 = vsub.s32 0, %v851
    %v853 = vrot.slane %v849, %v852
    %854 = vmatprep.subr.mxu0 0.0
    %855 = vmatpush1.msra.mxu0 %v817
    %856 = vmatprep.subr.mxu0 0.0
    %857 = vmatpush1.msra.mxu0 %v818
    %858 = vmatprep.subr.mxu0 0.0
    %859 = vmatpush1.msra.mxu0 %v819
    %860 = vmatprep.subr.mxu0 0.0
    %861 = vmatpush1.msra.mxu0 %v820
    %862 = vmatprep.subr.mxu0 0.0
    %863 = vmatpush1.msra.mxu0 %v821
    %864 = vmatprep.subr.mxu0 0.0
    %865 = vmatpush1.msra.mxu0 %v822
    %866 = vmatprep.subr.mxu0 0.0
    %867 = vmatpush1.msra.mxu0 %v823
    %868 = vmatprep.subr.mxu0 0.0
    %869 = vmatpush1.msra.mxu0 %v824
    %870 = vmatprep.subr.mxu0 0.0
    %871 = vmatpush1.msra.mxu0 %v825
    %872 = vmatprep.subr.mxu0 0.0
    %873 = vmatpush1.msra.mxu0 %v826
    %874 = vmatprep.subr.mxu0 0.0
    %875 = vmatpush1.msra.mxu0 %v827
    %876 = vmatprep.subr.mxu0 0.0
    %877 = vmatpush1.msra.mxu0 %v828
    %878 = vmatprep.subr.mxu0 0.0
    %879 = vmatpush1.msra.mxu0 %v829
    %880 = vmatprep.subr.mxu0 0.0
    %881 = vmatpush1.msra.mxu0 %v830
    %882 = vmatprep.subr.mxu0 0.0
    %883 = vmatpush1.msra.mxu0 %v831
    %884 = vmatprep.subr.mxu0 0.0
    %885 = vmatpush1.msra.mxu0 %v832
    %886 = vmatprep.subr.mxu0 0.0
    %887 = vmatpush1.msra.mxu0 %v833
    %888 = vmatprep.subr.mxu0 0.0
    %889 = vmatpush1.msra.mxu0 %v834
    %890 = vmatprep.subr.mxu0 0.0
    %891 = vmatpush1.msra.mxu0 %v835
    %892 = vmatprep.subr.mxu0 0.0
    %893 = vmatpush1.msra.mxu0 %v836
    %894 = vmatprep.subr.mxu0 0.0
    %895 = vmatpush1.msra.mxu0 %v837
    %896 = vmatprep.subr.mxu0 0.0
    %897 = vmatpush1.msra.mxu0 %v838
    %898 = vmatprep.subr.mxu0 0.0
    %899 = vmatpush1.msra.mxu0 %v839
    %900 = vmatprep.subr.mxu0 0.0
    %901 = vmatpush1.msra.mxu0 %v840
    %902 = vmatprep.subr.mxu0 0.0
    %903 = vmatpush1.msra.mxu0 %v841
    %904 = vmatprep.subr.mxu0 0.0
    %905 = vmatpush1.msra.mxu0 %v842
    %906 = vmatprep.subr.mxu0 0.0
    %907 = vmatpush1.msra.mxu0 %v843
    %908 = vmatprep.subr.mxu0 0.0
    %909 = vmatpush1.msra.mxu0 %v844
    %910 = vmatprep.subr.mxu0 0.0
    %911 = vmatpush1.msra.mxu0 %v845
    %912 = vmatprep.subr.mxu0 0.0
    %913 = vmatpush1.msra.mxu0 %v846
    %914 = vmatprep.subr.mxu0 0.0
    %915 = vmatpush1.msra.mxu0 %v847
    %916 = vmatprep.subr.mxu0 0.0
    %917 = vmatpush1.msra.mxu0 %v848
    %918 = vmatprep.mubr.f32.mxu0 %v816
    %919 = vmatmul.mubr.f32.gmra.mrb[0].mxu0 %v815
    %v920 = vpop.f32.mrb[0].mxu0
    %v921 = vadd.f32 %v853, %v920
    %v922 = vpop.f32.mrb[0].mxu0
    %923 = vdwg.mxu0
    %v924 = vtanh.pop %v921
    %925 = vst [vmem:[#allocation2 + $0x10] sm:$0xff] %v924
    %s926 = scalar_lea.vmem %s0, 32
    %v927 = vld [vmem:[%s926] sm:$0xff]
    %928 = vst [vmem:[#allocation2] sm:$0xff] %v927
    %v929 = vld [vmem:[#allocation2] sm:$0xff]
    %v930 = vld [vmem:[#allocation2 + $0x8] sm:$0xff]
    %v931 = vld [vmem:[%s1] sm:$0xff]
    %v932 = vld [vmem:[%s1 + $0x8] sm:$0xff]
    %v933 = vld [vmem:[%s1 + $0x10] sm:$0xff]
    %v934 = vld [vmem:[%s1 + $0x18] sm:$0xff]
    %v935 = vld [vmem:[%s1 + $0x20] sm:$0xff]
    %v936 = vld [vmem:[%s1 + $0x28] sm:$0xff]
    %v937 = vld [vmem:[%s1 + $0x30] sm:$0xff]
    %v938 = vld [vmem:[%s1 + $0x38] sm:$0xff]
    %v939 = vld [vmem:[%s1 + $0x40] sm:$0xff]
    %v940 = vld [vmem:[%s1 + $0x48] sm:$0xff]
    %v941 = vld [vmem:[%s1 + $0x50] sm:$0xff]
    %v942 = vld [vmem:[%s1 + $0x58] sm:$0xff]
    %v943 = vld [vmem:[%s1 + $0x60] sm:$0xff]
    %v944 = vld [vmem:[%s1 + $0x68] sm:$0xff]
    %v945 = vld [vmem:[%s1 + $0x70] sm:$0xff]
    %v946 = vld [vmem:[%s1 + $0x78] sm:$0xff]
    %v947 = vld [vmem:[%s1 + $0x80] sm:$0xff]
    %v948 = vld [vmem:[%s1 + $0x88] sm:$0xff]
    %v949 = vld [vmem:[%s1 + $0x90] sm:$0xff]
    %v950 = vld [vmem:[%s1 + $0x98] sm:$0xff]
    %v951 = vld [vmem:[%s1 + $0xa0] sm:$0xff]
    %v952 = vld [vmem:[%s1 + $0xa8] sm:$0xff]
    %v953 = vld [vmem:[%s1 + $0xb0] sm:$0xff]
    %v954 = vld [vmem:[%s1 + $0xb8] sm:$0xff]
    %v955 = vld [vmem:[%s1 + $0xc0] sm:$0xff]
    %v956 = vld [vmem:[%s1 + $0xc8] sm:$0xff]
    %v957 = vld [vmem:[%s1 + $0xd0] sm:$0xff]
    %v958 = vld [vmem:[%s1 + $0xd8] sm:$0xff]
    %v959 = vld [vmem:[%s1 + $0xe0] sm:$0xff]
    %v960 = vld [vmem:[%s1 + $0xe8] sm:$0xff]
    %v961 = vld [vmem:[%s1 + $0xf0] sm:$0xff]
    %v962 = vld [vmem:[%s1 + $0xf8] sm:$0xff]
    %v963 = vld [vmem:[%s2] sm:$0x1]
    %v964 = vlaneseq
    %v965 = vshrl.u32 %v964, 7
    %v966 = vsub.s32 0, %v965
    %v967 = vrot.slane %v963, %v966
    %968 = vmatprep.subr.mxu0 0.0
    %969 = vmatpush1.msra.mxu0 %v931
    %970 = vmatprep.subr.mxu0 0.0
    %971 = vmatpush1.msra.mxu0 %v932
    %972 = vmatprep.subr.mxu0 0.0
    %973 = vmatpush1.msra.mxu0 %v933
    %974 = vmatprep.subr.mxu0 0.0
    %975 = vmatpush1.msra.mxu0 %v934
    %976 = vmatprep.subr.mxu0 0.0
    %977 = vmatpush1.msra.mxu0 %v935
    %978 = vmatprep.subr.mxu0 0.0
    %979 = vmatpush1.msra.mxu0 %v936
    %980 = vmatprep.subr.mxu0 0.0
    %981 = vmatpush1.msra.mxu0 %v937
    %982 = vmatprep.subr.mxu0 0.0
    %983 = vmatpush1.msra.mxu0 %v938
    %984 = vmatprep.subr.mxu0 0.0
    %985 = vmatpush1.msra.mxu0 %v939
    %986 = vmatprep.subr.mxu0 0.0
    %987 = vmatpush1.msra.mxu0 %v940
    %988 = vmatprep.subr.mxu0 0.0
    %989 = vmatpush1.msra.mxu0 %v941
    %990 = vmatprep.subr.mxu0 0.0
    %991 = vmatpush1.msra.mxu0 %v942
    %992 = vmatprep.subr.mxu0 0.0
    %993 = vmatpush1.msra.mxu0 %v943
    %994 = vmatprep.subr.mxu0 0.0
    %995 = vmatpush1.msra.mxu0 %v944
    %996 = vmatprep.subr.mxu0 0.0
    %997 = vmatpush1.msra.mxu0 %v945
    %998 = vmatprep.subr.mxu0 0.0
    %999 = vmatpush1.msra.mxu0 %v946
    %1000 = vmatprep.subr.mxu0 0.0
    %1001 = vmatpush1.msra.mxu0 %v947
    %1002 = vmatprep.subr.mxu0 0.0
    %1003 = vmatpush1.msra.mxu0 %v948
    %1004 = vmatprep.subr.mxu0 0.0
    %1005 = vmatpush1.msra.mxu0 %v949
    %1006 = vmatprep.subr.mxu0 0.0
    %1007 = vmatpush1.msra.mxu0 %v950
    %1008 = vmatprep.subr.mxu0 0.0
    %1009 = vmatpush1.msra.mxu0 %v951
    %1010 = vmatprep.subr.mxu0 0.0
    %1011 = vmatpush1.msra.mxu0 %v952
    %1012 = vmatprep.subr.mxu0 0.0
    %1013 = vmatpush1.msra.mxu0 %v953
    %1014 = vmatprep.subr.mxu0 0.0
    %1015 = vmatpush1.msra.mxu0 %v954
    %1016 = vmatprep.subr.mxu0 0.0
    %1017 = vmatpush1.msra.mxu0 %v955
    %1018 = vmatprep.subr.mxu0 0.0
    %1019 = vmatpush1.msra.mxu0 %v956
    %1020 = vmatprep.subr.mxu0 0.0
    %1021 = vmatpush1.msra.mxu0 %v957
    %1022 = vmatprep.subr.mxu0 0.0
    %1023 = vmatpush1.msra.mxu0 %v958
    %1024 = vmatprep.subr.mxu0 0.0
    %1025 = vmatpush1.msra.mxu0 %v959
    %1026 = vmatprep.subr.mxu0 0.0
    %1027 = vmatpush1.msra.mxu0 %v960
    %1028 = vmatprep.subr.mxu0 0.0
    %1029 = vmatpush1.msra.mxu0 %v961
    %1030 = vmatprep.subr.mxu0 0.0
    %1031 = vmatpush1.msra.mxu0 %v962
    %1032 = vmatprep.mubr.f32.mxu0 %v930
    %1033 = vmatmul.mubr.f32.gmra.mrb[0].mxu0 %v929
    %v1034 = vpop.f32.mrb[0].mxu0
    %v1035 = vadd.f32 %v967, %v1034
    %v1036 = vpop.f32.mrb[0].mxu0
    %1037 = vdwg.mxu0
    %v1038 = vtanh.pop %v1035
    %1039 = vst [vmem:[#allocation2 + $0x8] sm:$0xff] %v1038
    %v1040 = vld [vmem:[#allocation2 + $0x8] sm:$0xff]
    %v1041 = vld [vmem:[#allocation2 + $0x10] sm:$0xff]
    %v1042 = vld [vmem:[%s1 + $0x100] sm:$0xff]
    %v1043 = vld [vmem:[%s1 + $0x108] sm:$0xff]
    %v1044 = vld [vmem:[%s1 + $0x110] sm:$0xff]
    %v1045 = vld [vmem:[%s1 + $0x118] sm:$0xff]
    %v1046 = vld [vmem:[%s1 + $0x120] sm:$0xff]
    %v1047 = vld [vmem:[%s1 + $0x128] sm:$0xff]
    %v1048 = vld [vmem:[%s1 + $0x130] sm:$0xff]
    %v1049 = vld [vmem:[%s1 + $0x138] sm:$0xff]
    %v1050 = vld [vmem:[%s1 + $0x140] sm:$0xff]
    %v1051 = vld [vmem:[%s1 + $0x148] sm:$0xff]
    %v1052 = vld [vmem:[%s1 + $0x150] sm:$0xff]
    %v1053 = vld [vmem:[%s1 + $0x158] sm:$0xff]
    %v1054 = vld [vmem:[%s1 + $0x160] sm:$0xff]
    %v1055 = vld [vmem:[%s1 + $0x168] sm:$0xff]
    %v1056 = vld [vmem:[%s1 + $0x170] sm:$0xff]
    %v1057 = vld [vmem:[%s1 + $0x178] sm:$0xff]
    %v1058 = vld [vmem:[%s1 + $0x180] sm:$0xff]
    %v1059 = vld [vmem:[%s1 + $0x188] sm:$0xff]
    %v1060 = vld [vmem:[%s1 + $0x190] sm:$0xff]
    %v1061 = vld [vmem:[%s1 + $0x198] sm:$0xff]
    %v1062 = vld [vmem:[%s1 + $0x1a0] sm:$0xff]
    %v1063 = vld [vmem:[%s1 + $0x1a8] sm:$0xff]
    %v1064 = vld [vmem:[%s1 + $0x1b0] sm:$0xff]
    %v1065 = vld [vmem:[%s1 + $0x1b8] sm:$0xff]
    %v1066 = vld [vmem:[%s1 + $0x1c0] sm:$0xff]
    %v1067 = vld [vmem:[%s1 + $0x1c8] sm:$0xff]
    %v1068 = vld [vmem:[%s1 + $0x1d0] sm:$0xff]
    %v1069 = vld [vmem:[%s1 + $0x1d8] sm:$0xff]
    %v1070 = vld [vmem:[%s1 + $0x1e0] sm:$0xff]
    %v1071 = vld [vmem:[%s1 + $0x1e8] sm:$0xff]
    %v1072 = vld [vmem:[%s1 + $0x1f0] sm:$0xff]
    %v1073 = vld [vmem:[%s1 + $0x1f8] sm:$0xff]
    %v1074 = vld [vmem:[%s2 + $0x1] sm:$0x1]
    %v1075 = vlaneseq
    %v1076 = vshrl.u32 %v1075, 7
    %v1077 = vsub.s32 0, %v1076
    %v1078 = vrot.slane %v1074, %v1077
    %1079 = vmatprep.subr.mxu0 0.0
    %1080 = vmatpush1.msra.mxu0 %v1042
    %1081 = vmatprep.subr.mxu0 0.0
    %1082 = vmatpush1.msra.mxu0 %v1043
    %1083 = vmatprep.subr.mxu0 0.0
    %1084 = vmatpush1.msra.mxu0 %v1044
    %1085 = vmatprep.subr.mxu0 0.0
    %1086 = vmatpush1.msra.mxu0 %v1045
    %1087 = vmatprep.subr.mxu0 0.0
    %1088 = vmatpush1.msra.mxu0 %v1046
    %1089 = vmatprep.subr.mxu0 0.0
    %1090 = vmatpush1.msra.mxu0 %v1047
    %1091 = vmatprep.subr.mxu0 0.0
    %1092 = vmatpush1.msra.mxu0 %v1048
    %1093 = vmatprep.subr.mxu0 0.0
    %1094 = vmatpush1.msra.mxu0 %v1049
    %1095 = vmatprep.subr.mxu0 0.0
    %1096 = vmatpush1.msra.mxu0 %v1050
    %1097 = vmatprep.subr.mxu0 0.0
    %1098 = vmatpush1.msra.mxu0 %v1051
    %1099 = vmatprep.subr.mxu0 0.0
    %1100 = vmatpush1.msra.mxu0 %v1052
    %1101 = vmatprep.subr.mxu0 0.0
    %1102 = vmatpush1.msra.mxu0 %v1053
    %1103 = vmatprep.subr.mxu0 0.0
    %1104 = vmatpush1.msra.mxu0 %v1054
    %1105 = vmatprep.subr.mxu0 0.0
    %1106 = vmatpush1.msra.mxu0 %v1055
    %1107 = vmatprep.subr.mxu0 0.0
    %1108 = vmatpush1.msra.mxu0 %v1056
    %1109 = vmatprep.subr.mxu0 0.0
    %1110 = vmatpush1.msra.mxu0 %v1057
    %1111 = vmatprep.subr.mxu0 0.0
    %1112 = vmatpush1.msra.mxu0 %v1058
    %1113 = vmatprep.subr.mxu0 0.0
    %1114 = vmatpush1.msra.mxu0 %v1059
    %1115 = vmatprep.subr.mxu0 0.0
    %1116 = vmatpush1.msra.mxu0 %v1060
    %1117 = vmatprep.subr.mxu0 0.0
    %1118 = vmatpush1.msra.mxu0 %v1061
    %1119 = vmatprep.subr.mxu0 0.0
    %1120 = vmatpush1.msra.mxu0 %v1062
    %1121 = vmatprep.subr.mxu0 0.0
    %1122 = vmatpush1.msra.mxu0 %v1063
    %1123 = vmatprep.subr.mxu0 0.0
    %1124 = vmatpush1.msra.mxu0 %v1064
    %1125 = vmatprep.subr.mxu0 0.0
    %1126 = vmatpush1.msra.mxu0 %v1065
    %1127 = vmatprep.subr.mxu0 0.0
    %1128 = vmatpush1.msra.mxu0 %v1066
    %1129 = vmatprep.subr.mxu0 0.0
    %1130 = vmatpush1.msra.mxu0 %v1067
    %1131 = vmatprep.subr.mxu0 0.0
    %1132 = vmatpush1.msra.mxu0 %v1068
    %1133 = vmatprep.subr.mxu0 0.0
    %1134 = vmatpush1.msra.mxu0 %v1069
    %1135 = vmatprep.subr.mxu0 0.0
    %1136 = vmatpush1.msra.mxu0 %v1070
    %1137 = vmatprep.subr.mxu0 0.0
    %1138 = vmatpush1.msra.mxu0 %v1071
    %1139 = vmatprep.subr.mxu0 0.0
    %1140 = vmatpush1.msra.mxu0 %v1072
    %1141 = vmatprep.subr.mxu0 0.0
    %1142 = vmatpush1.msra.mxu0 %v1073
    %1143 = vmatprep.mubr.f32.mxu0 %v1041
    %1144 = vmatmul.mubr.f32.gmra.mrb[0].mxu0 %v1040
    %v1145 = vpop.f32.mrb[0].mxu0
    %v1146 = vadd.f32 %v1078, %v1145
    %v1147 = vpop.f32.mrb[0].mxu0
    %1148 = vdwg.mxu0
    %v1149 = vtanh.pop %v1146
    %1150 = vst [vmem:[#allocation2 + $0x10] sm:$0xff] %v1149
    %s1151 = scalar_lea.vmem %s0, 40
    %v1152 = vld [vmem:[%s1151] sm:$0xff]
    %1153 = vst [vmem:[#allocation2] sm:$0xff] %v1152
    %v1154 = vld [vmem:[#allocation2] sm:$0xff]
    %v1155 = vld [vmem:[#allocation2 + $0x8] sm:$0xff]
    %v1156 = vld [vmem:[%s1] sm:$0xff]
    %v1157 = vld [vmem:[%s1 + $0x8] sm:$0xff]
    %v1158 = vld [vmem:[%s1 + $0x10] sm:$0xff]
    %v1159 = vld [vmem:[%s1 + $0x18] sm:$0xff]
    %v1160 = vld [vmem:[%s1 + $0x20] sm:$0xff]
    %v1161 = vld [vmem:[%s1 + $0x28] sm:$0xff]
    %v1162 = vld [vmem:[%s1 + $0x30] sm:$0xff]
    %v1163 = vld [vmem:[%s1 + $0x38] sm:$0xff]
    %v1164 = vld [vmem:[%s1 + $0x40] sm:$0xff]
    %v1165 = vld [vmem:[%s1 + $0x48] sm:$0xff]
    %v1166 = vld [vmem:[%s1 + $0x50] sm:$0xff]
    %v1167 = vld [vmem:[%s1 + $0x58] sm:$0xff]
    %v1168 = vld [vmem:[%s1 + $0x60] sm:$0xff]
    %v1169 = vld [vmem:[%s1 + $0x68] sm:$0xff]
    %v1170 = vld [vmem:[%s1 + $0x70] sm:$0xff]
    %v1171 = vld [vmem:[%s1 + $0x78] sm:$0xff]
    %v1172 = vld [vmem:[%s1 + $0x80] sm:$0xff]
    %v1173 = vld [vmem:[%s1 + $0x88] sm:$0xff]
    %v1174 = vld [vmem:[%s1 + $0x90] sm:$0xff]
    %v1175 = vld [vmem:[%s1 + $0x98] sm:$0xff]
    %v1176 = vld [vmem:[%s1 + $0xa0] sm:$0xff]
    %v1177 = vld [vmem:[%s1 + $0xa8] sm:$0xff]
    %v1178 = vld [vmem:[%s1 + $0xb0] sm:$0xff]
    %v1179 = vld [vmem:[%s1 + $0xb8] sm:$0xff]
    %v1180 = vld [vmem:[%s1 + $0xc0] sm:$0xff]
    %v1181 = vld [vmem:[%s1 + $0xc8] sm:$0xff]
    %v1182 = vld [vmem:[%s1 + $0xd0] sm:$0xff]
    %v1183 = vld [vmem:[%s1 + $0xd8] sm:$0xff]
    %v1184 = vld [vmem:[%s1 + $0xe0] sm:$0xff]
    %v1185 = vld [vmem:[%s1 + $0xe8] sm:$0xff]
    %v1186 = vld [vmem:[%s1 + $0xf0] sm:$0xff]
    %v1187 = vld [vmem:[%s1 + $0xf8] sm:$0xff]
    %v1188 = vld [vmem:[%s2] sm:$0x1]
    %v1189 = vlaneseq
    %v1190 = vshrl.u32 %v1189, 7
    %v1191 = vsub.s32 0, %v1190
    %v1192 = vrot.slane %v1188, %v1191
    %1193 = vmatprep.subr.mxu0 0.0
    %1194 = vmatpush1.msra.mxu0 %v1156
    %1195 = vmatprep.subr.mxu0 0.0
    %1196 = vmatpush1.msra.mxu0 %v1157
    %1197 = vmatprep.subr.mxu0 0.0
    %1198 = vmatpush1.msra.mxu0 %v1158
    %1199 = vmatprep.subr.mxu0 0.0
    %1200 = vmatpush1.msra.mxu0 %v1159
    %1201 = vmatprep.subr.mxu0 0.0
    %1202 = vmatpush1.msra.mxu0 %v1160
    %1203 = vmatprep.subr.mxu0 0.0
    %1204 = vmatpush1.msra.mxu0 %v1161
    %1205 = vmatprep.subr.mxu0 0.0
    %1206 = vmatpush1.msra.mxu0 %v1162
    %1207 = vmatprep.subr.mxu0 0.0
    %1208 = vmatpush1.msra.mxu0 %v1163
    %1209 = vmatprep.subr.mxu0 0.0
    %1210 = vmatpush1.msra.mxu0 %v1164
    %1211 = vmatprep.subr.mxu0 0.0
    %1212 = vmatpush1.msra.mxu0 %v1165
    %1213 = vmatprep.subr.mxu0 0.0
    %1214 = vmatpush1.msra.mxu0 %v1166
    %1215 = vmatprep.subr.mxu0 0.0
    %1216 = vmatpush1.msra.mxu0 %v1167
    %1217 = vmatprep.subr.mxu0 0.0
    %1218 = vmatpush1.msra.mxu0 %v1168
    %1219 = vmatprep.subr.mxu0 0.0
    %1220 = vmatpush1.msra.mxu0 %v1169
    %1221 = vmatprep.subr.mxu0 0.0
    %1222 = vmatpush1.msra.mxu0 %v1170
    %1223 = vmatprep.subr.mxu0 0.0
    %1224 = vmatpush1.msra.mxu0 %v1171
    %1225 = vmatprep.subr.mxu0 0.0
    %1226 = vmatpush1.msra.mxu0 %v1172
    %1227 = vmatprep.subr.mxu0 0.0
    %1228 = vmatpush1.msra.mxu0 %v1173
    %1229 = vmatprep.subr.mxu0 0.0
    %1230 = vmatpush1.msra.mxu0 %v1174
    %1231 = vmatprep.subr.mxu0 0.0
    %1232 = vmatpush1.msra.mxu0 %v1175
    %1233 = vmatprep.subr.mxu0 0.0
    %1234 = vmatpush1.msra.mxu0 %v1176
    %1235 = vmatprep.subr.mxu0 0.0
    %1236 = vmatpush1.msra.mxu0 %v1177
    %1237 = vmatprep.subr.mxu0 0.0
    %1238 = vmatpush1.msra.mxu0 %v1178
    %1239 = vmatprep.subr.mxu0 0.0
    %1240 = vmatpush1.msra.mxu0 %v1179
    %1241 = vmatprep.subr.mxu0 0.0
    %1242 = vmatpush1.msra.mxu0 %v1180
    %1243 = vmatprep.subr.mxu0 0.0
    %1244 = vmatpush1.msra.mxu0 %v1181
    %1245 = vmatprep.subr.mxu0 0.0
    %1246 = vmatpush1.msra.mxu0 %v1182
    %1247 = vmatprep.subr.mxu0 0.0
    %1248 = vmatpush1.msra.mxu0 %v1183
    %1249 = vmatprep.subr.mxu0 0.0
    %1250 = vmatpush1.msra.mxu0 %v1184
    %1251 = vmatprep.subr.mxu0 0.0
    %1252 = vmatpush1.msra.mxu0 %v1185
    %1253 = vmatprep.subr.mxu0 0.0
    %1254 = vmatpush1.msra.mxu0 %v1186
    %1255 = vmatprep.subr.mxu0 0.0
    %1256 = vmatpush1.msra.mxu0 %v1187
    %1257 = vmatprep.mubr.f32.mxu0 %v1155
    %1258 = vmatmul.mubr.f32.gmra.mrb[0].mxu0 %v1154
    %v1259 = vpop.f32.mrb[0].mxu0
    %v1260 = vadd.f32 %v1192, %v1259
    %v1261 = vpop.f32.mrb[0].mxu0
    %1262 = vdwg.mxu0
    %v1263 = vtanh.pop %v1260
    %1264 = vst [vmem:[#allocation2 + $0x8] sm:$0xff] %v1263
    %v1265 = vld [vmem:[#allocation2 + $0x8] sm:$0xff]
    %v1266 = vld [vmem:[#allocation2 + $0x10] sm:$0xff]
    %v1267 = vld [vmem:[%s1 + $0x100] sm:$0xff]
    %v1268 = vld [vmem:[%s1 + $0x108] sm:$0xff]
    %v1269 = vld [vmem:[%s1 + $0x110] sm:$0xff]
    %v1270 = vld [vmem:[%s1 + $0x118] sm:$0xff]
    %v1271 = vld [vmem:[%s1 + $0x120] sm:$0xff]
    %v1272 = vld [vmem:[%s1 + $0x128] sm:$0xff]
    %v1273 = vld [vmem:[%s1 + $0x130] sm:$0xff]
    %v1274 = vld [vmem:[%s1 + $0x138] sm:$0xff]
    %v1275 = vld [vmem:[%s1 + $0x140] sm:$0xff]
    %v1276 = vld [vmem:[%s1 + $0x148] sm:$0xff]
    %v1277 = vld [vmem:[%s1 + $0x150] sm:$0xff]
    %v1278 = vld [vmem:[%s1 + $0x158] sm:$0xff]
    %v1279 = vld [vmem:[%s1 + $0x160] sm:$0xff]
    %v1280 = vld [vmem:[%s1 + $0x168] sm:$0xff]
    %v1281 = vld [vmem:[%s1 + $0x170] sm:$0xff]
    %v1282 = vld [vmem:[%s1 + $0x178] sm:$0xff]
    %v1283 = vld [vmem:[%s1 + $0x180] sm:$0xff]
    %v1284 = vld [vmem:[%s1 + $0x188] sm:$0xff]
    %v1285 = vld [vmem:[%s1 + $0x190] sm:$0xff]
    %v1286 = vld [vmem:[%s1 + $0x198] sm:$0xff]
    %v1287 = vld [vmem:[%s1 + $0x1a0] sm:$0xff]
    %v1288 = vld [vmem:[%s1 + $0x1a8] sm:$0xff]
    %v1289 = vld [vmem:[%s1 + $0x1b0] sm:$0xff]
    %v1290 = vld [vmem:[%s1 + $0x1b8] sm:$0xff]
    %v1291 = vld [vmem:[%s1 + $0x1c0] sm:$0xff]
    %v1292 = vld [vmem:[%s1 + $0x1c8] sm:$0xff]
    %v1293 = vld [vmem:[%s1 + $0x1d0] sm:$0xff]
    %v1294 = vld [vmem:[%s1 + $0x1d8] sm:$0xff]
    %v1295 = vld [vmem:[%s1 + $0x1e0] sm:$0xff]
    %v1296 = vld [vmem:[%s1 + $0x1e8] sm:$0xff]
    %v1297 = vld [vmem:[%s1 + $0x1f0] sm:$0xff]
    %v1298 = vld [vmem:[%s1 + $0x1f8] sm:$0xff]
    %v1299 = vld [vmem:[%s2 + $0x1] sm:$0x1]
    %v1300 = vlaneseq
    %v1301 = vshrl.u32 %v1300, 7
    %v1302 = vsub.s32 0, %v1301
    %v1303 = vrot.slane %v1299, %v1302
    %1304 = vmatprep.subr.mxu0 0.0
    %1305 = vmatpush1.msra.mxu0 %v1267
    %1306 = vmatprep.subr.mxu0 0.0
    %1307 = vmatpush1.msra.mxu0 %v1268
    %1308 = vmatprep.subr.mxu0 0.0
    %1309 = vmatpush1.msra.mxu0 %v1269
    %1310 = vmatprep.subr.mxu0 0.0
    %1311 = vmatpush1.msra.mxu0 %v1270
    %1312 = vmatprep.subr.mxu0 0.0
    %1313 = vmatpush1.msra.mxu0 %v1271
    %1314 = vmatprep.subr.mxu0 0.0
    %1315 = vmatpush1.msra.mxu0 %v1272
    %1316 = vmatprep.subr.mxu0 0.0
    %1317 = vmatpush1.msra.mxu0 %v1273
    %1318 = vmatprep.subr.mxu0 0.0
    %1319 = vmatpush1.msra.mxu0 %v1274
    %1320 = vmatprep.subr.mxu0 0.0
    %1321 = vmatpush1.msra.mxu0 %v1275
    %1322 = vmatprep.subr.mxu0 0.0
    %1323 = vmatpush1.msra.mxu0 %v1276
    %1324 = vmatprep.subr.mxu0 0.0
    %1325 = vmatpush1.msra.mxu0 %v1277
    %1326 = vmatprep.subr.mxu0 0.0
    %1327 = vmatpush1.msra.mxu0 %v1278
    %1328 = vmatprep.subr.mxu0 0.0
    %1329 = vmatpush1.msra.mxu0 %v1279
    %1330 = vmatprep.subr.mxu0 0.0
    %1331 = vmatpush1.msra.mxu0 %v1280
    %1332 = vmatprep.subr.mxu0 0.0
    %1333 = vmatpush1.msra.mxu0 %v1281
    %1334 = vmatprep.subr.mxu0 0.0
    %1335 = vmatpush1.msra.mxu0 %v1282
    %1336 = vmatprep.subr.mxu0 0.0
    %1337 = vmatpush1.msra.mxu0 %v1283
    %1338 = vmatprep.subr.mxu0 0.0
    %1339 = vmatpush1.msra.mxu0 %v1284
    %1340 = vmatprep.subr.mxu0 0.0
    %1341 = vmatpush1.msra.mxu0 %v1285
    %1342 = vmatprep.subr.mxu0 0.0
    %1343 = vmatpush1.msra.mxu0 %v1286
    %1344 = vmatprep.subr.mxu0 0.0
    %1345 = vmatpush1.msra.mxu0 %v1287
    %1346 = vmatprep.subr.mxu0 0.0
    %1347 = vmatpush1.msra.mxu0 %v1288
    %1348 = vmatprep.subr.mxu0 0.0
    %1349 = vmatpush1.msra.mxu0 %v1289
    %1350 = vmatprep.subr.mxu0 0.0
    %1351 = vmatpush1.msra.mxu0 %v1290
    %1352 = vmatprep.subr.mxu0 0.0
    %1353 = vmatpush1.msra.mxu0 %v1291
    %1354 = vmatprep.subr.mxu0 0.0
    %1355 = vmatpush1.msra.mxu0 %v1292
    %1356 = vmatprep.subr.mxu0 0.0
    %1357 = vmatpush1.msra.mxu0 %v1293
    %1358 = vmatprep.subr.mxu0 0.0
    %1359 = vmatpush1.msra.mxu0 %v1294
    %1360 = vmatprep.subr.mxu0 0.0
    %1361 = vmatpush1.msra.mxu0 %v1295
    %1362 = vmatprep.subr.mxu0 0.0
    %1363 = vmatpush1.msra.mxu0 %v1296
    %1364 = vmatprep.subr.mxu0 0.0
    %1365 = vmatpush1.msra.mxu0 %v1297
    %1366 = vmatprep.subr.mxu0 0.0
    %1367 = vmatpush1.msra.mxu0 %v1298
    %1368 = vmatprep.mubr.f32.mxu0 %v1266
    %1369 = vmatmul.mubr.f32.gmra.mrb[0].mxu0 %v1265
    %v1370 = vpop.f32.mrb[0].mxu0
    %v1371 = vadd.f32 %v1303, %v1370
    %v1372 = vpop.f32.mrb[0].mxu0
    %1373 = vdwg.mxu0
    %v1374 = vtanh.pop %v1371
    %1375 = vst [vmem:[#allocation2 + $0x10] sm:$0xff] %v1374
    %s1376 = scalar_lea.vmem %s0, 48
    %v1377 = vld [vmem:[%s1376] sm:$0xff]
    %1378 = vst [vmem:[#allocation2] sm:$0xff] %v1377
    %v1379 = vld [vmem:[#allocation2] sm:$0xff]
    %v1380 = vld [vmem:[#allocation2 + $0x8] sm:$0xff]
    %v1381 = vld [vmem:[%s1] sm:$0xff]
    %v1382 = vld [vmem:[%s1 + $0x8] sm:$0xff]
    %v1383 = vld [vmem:[%s1 + $0x10] sm:$0xff]
    %v1384 = vld [vmem:[%s1 + $0x18] sm:$0xff]
    %v1385 = vld [vmem:[%s1 + $0x20] sm:$0xff]
    %v1386 = vld [vmem:[%s1 + $0x28] sm:$0xff]
    %v1387 = vld [vmem:[%s1 + $0x30] sm:$0xff]
    %v1388 = vld [vmem:[%s1 + $0x38] sm:$0xff]
    %v1389 = vld [vmem:[%s1 + $0x40] sm:$0xff]
    %v1390 = vld [vmem:[%s1 + $0x48] sm:$0xff]
    %v1391 = vld [vmem:[%s1 + $0x50] sm:$0xff]
    %v1392 = vld [vmem:[%s1 + $0x58] sm:$0xff]
    %v1393 = vld [vmem:[%s1 + $0x60] sm:$0xff]
    %v1394 = vld [vmem:[%s1 + $0x68] sm:$0xff]
    %v1395 = vld [vmem:[%s1 + $0x70] sm:$0xff]
    %v1396 = vld [vmem:[%s1 + $0x78] sm:$0xff]
    %v1397 = vld [vmem:[%s1 + $0x80] sm:$0xff]
    %v1398 = vld [vmem:[%s1 + $0x88] sm:$0xff]
    %v1399 = vld [vmem:[%s1 + $0x90] sm:$0xff]
    %v1400 = vld [vmem:[%s1 + $0x98] sm:$0xff]
    %v1401 = vld [vmem:[%s1 + $0xa0] sm:$0xff]
    %v1402 = vld [vmem:[%s1 + $0xa8] sm:$0xff]
    %v1403 = vld [vmem:[%s1 + $0xb0] sm:$0xff]
    %v1404 = vld [vmem:[%s1 + $0xb8] sm:$0xff]
    %v1405 = vld [vmem:[%s1 + $0xc0] sm:$0xff]
    %v1406 = vld [vmem:[%s1 + $0xc8] sm:$0xff]
    %v1407 = vld [vmem:[%s1 + $0xd0] sm:$0xff]
    %v1408 = vld [vmem:[%s1 + $0xd8] sm:$0xff]
    %v1409 = vld [vmem:[%s1 + $0xe0] sm:$0xff]
    %v1410 = vld [vmem:[%s1 + $0xe8] sm:$0xff]
    %v1411 = vld [vmem:[%s1 + $0xf0] sm:$0xff]
    %v1412 = vld [vmem:[%s1 + $0xf8] sm:$0xff]
    %v1413 = vld [vmem:[%s2] sm:$0x1]
    %v1414 = vlaneseq
    %v1415 = vshrl.u32 %v1414, 7
    %v1416 = vsub.s32 0, %v1415
    %v1417 = vrot.slane %v1413, %v1416
    %1418 = vmatprep.subr.mxu0 0.0
    %1419 = vmatpush1.msra.mxu0 %v1381
    %1420 = vmatprep.subr.mxu0 0.0
    %1421 = vmatpush1.msra.mxu0 %v1382
    %1422 = vmatprep.subr.mxu0 0.0
    %1423 = vmatpush1.msra.mxu0 %v1383
    %1424 = vmatprep.subr.mxu0 0.0
    %1425 = vmatpush1.msra.mxu0 %v1384
    %1426 = vmatprep.subr.mxu0 0.0
    %1427 = vmatpush1.msra.mxu0 %v1385
    %1428 = vmatprep.subr.mxu0 0.0
    %1429 = vmatpush1.msra.mxu0 %v1386
    %1430 = vmatprep.subr.mxu0 0.0
    %1431 = vmatpush1.msra.mxu0 %v1387
    %1432 = vmatprep.subr.mxu0 0.0
    %1433 = vmatpush1.msra.mxu0 %v1388
    %1434 = vmatprep.subr.mxu0 0.0
    %1435 = vmatpush1.msra.mxu0 %v1389
    %1436 = vmatprep.subr.mxu0 0.0
    %1437 = vmatpush1.msra.mxu0 %v1390
    %1438 = vmatprep.subr.mxu0 0.0
    %1439 = vmatpush1.msra.mxu0 %v1391
    %1440 = vmatprep.subr.mxu0 0.0
    %1441 = vmatpush1.msra.mxu0 %v1392
    %1442 = vmatprep.subr.mxu0 0.0
    %1443 = vmatpush1.msra.mxu0 %v1393
    %1444 = vmatprep.subr.mxu0 0.0
    %1445 = vmatpush1.msra.mxu0 %v1394
    %1446 = vmatprep.subr.mxu0 0.0
    %1447 = vmatpush1.msra.mxu0 %v1395
    %1448 = vmatprep.subr.mxu0 0.0
    %1449 = vmatpush1.msra.mxu0 %v1396
    %1450 = vmatprep.subr.mxu0 0.0
    %1451 = vmatpush1.msra.mxu0 %v1397
    %1452 = vmatprep.subr.mxu0 0.0
    %1453 = vmatpush1.msra.mxu0 %v1398
    %1454 = vmatprep.subr.mxu0 0.0
    %1455 = vmatpush1.msra.mxu0 %v1399
    %1456 = vmatprep.subr.mxu0 0.0
    %1457 = vmatpush1.msra.mxu0 %v1400
    %1458 = vmatprep.subr.mxu0 0.0
    %1459 = vmatpush1.msra.mxu0 %v1401
    %1460 = vmatprep.subr.mxu0 0.0
    %1461 = vmatpush1.msra.mxu0 %v1402
    %1462 = vmatprep.subr.mxu0 0.0
    %1463 = vmatpush1.msra.mxu0 %v1403
    %1464 = vmatprep.subr.mxu0 0.0
    %1465 = vmatpush1.msra.mxu0 %v1404
    %1466 = vmatprep.subr.mxu0 0.0
    %1467 = vmatpush1.msra.mxu0 %v1405
    %1468 = vmatprep.subr.mxu0 0.0
    %1469 = vmatpush1.msra.mxu0 %v1406
    %1470 = vmatprep.subr.mxu0 0.0
    %1471 = vmatpush1.msra.mxu0 %v1407
    %1472 = vmatprep.subr.mxu0 0.0
    %1473 = vmatpush1.msra.mxu0 %v1408
    %1474 = vmatprep.subr.mxu0 0.0
    %1475 = vmatpush1.msra.mxu0 %v1409
    %1476 = vmatprep.subr.mxu0 0.0
    %1477 = vmatpush1.msra.mxu0 %v1410
    %1478 = vmatprep.subr.mxu0 0.0
    %1479 = vmatpush1.msra.mxu0 %v1411
    %1480 = vmatprep.subr.mxu0 0.0
    %1481 = vmatpush1.msra.mxu0 %v1412
    %1482 = vmatprep.mubr.f32.mxu0 %v1380
    %1483 = vmatmul.mubr.f32.gmra.mrb[0].mxu0 %v1379
    %v1484 = vpop.f32.mrb[0].mxu0
    %v1485 = vadd.f32 %v1417, %v1484
    %v1486 = vpop.f32.mrb[0].mxu0
    %1487 = vdwg.mxu0
    %v1488 = vtanh.pop %v1485
    %1489 = vst [vmem:[#allocation2 + $0x8] sm:$0xff] %v1488
    %v1490 = vld [vmem:[#allocation2 + $0x8] sm:$0xff]
    %v1491 = vld [vmem:[#allocation2 + $0x10] sm:$0xff]
    %v1492 = vld [vmem:[%s1 + $0x100] sm:$0xff]
    %v1493 = vld [vmem:[%s1 + $0x108] sm:$0xff]
    %v1494 = vld [vmem:[%s1 + $0x110] sm:$0xff]
    %v1495 = vld [vmem:[%s1 + $0x118] sm:$0xff]
    %v1496 = vld [vmem:[%s1 + $0x120] sm:$0xff]
    %v1497 = vld [vmem:[%s1 + $0x128] sm:$0xff]
    %v1498 = vld [vmem:[%s1 + $0x130] sm:$0xff]
    %v1499 = vld [vmem:[%s1 + $0x138] sm:$0xff]
    %v1500 = vld [vmem:[%s1 + $0x140] sm:$0xff]
    %v1501 = vld [vmem:[%s1 + $0x148] sm:$0xff]
    %v1502 = vld [vmem:[%s1 + $0x150] sm:$0xff]
    %v1503 = vld [vmem:[%s1 + $0x158] sm:$0xff]
    %v1504 = vld [vmem:[%s1 + $0x160] sm:$0xff]
    %v1505 = vld [vmem:[%s1 + $0x168] sm:$0xff]
    %v1506 = vld [vmem:[%s1 + $0x170] sm:$0xff]
    %v1507 = vld [vmem:[%s1 + $0x178] sm:$0xff]
    %v1508 = vld [vmem:[%s1 + $0x180] sm:$0xff]
    %v1509 = vld [vmem:[%s1 + $0x188] sm:$0xff]
    %v1510 = vld [vmem:[%s1 + $0x190] sm:$0xff]
    %v1511 = vld [vmem:[%s1 + $0x198] sm:$0xff]
    %v1512 = vld [vmem:[%s1 + $0x1a0] sm:$0xff]
    %v1513 = vld [vmem:[%s1 + $0x1a8] sm:$0xff]
    %v1514 = vld [vmem:[%s1 + $0x1b0] sm:$0xff]
    %v1515 = vld [vmem:[%s1 + $0x1b8] sm:$0xff]
    %v1516 = vld [vmem:[%s1 + $0x1c0] sm:$0xff]
    %v1517 = vld [vmem:[%s1 + $0x1c8] sm:$0xff]
    %v1518 = vld [vmem:[%s1 + $0x1d0] sm:$0xff]
    %v1519 = vld [vmem:[%s1 + $0x1d8] sm:$0xff]
    %v1520 = vld [vmem:[%s1 + $0x1e0] sm:$0xff]
    %v1521 = vld [vmem:[%s1 + $0x1e8] sm:$0xff]
    %v1522 = vld [vmem:[%s1 + $0x1f0] sm:$0xff]
    %v1523 = vld [vmem:[%s1 + $0x1f8] sm:$0xff]
    %v1524 = vld [vmem:[%s2 + $0x1] sm:$0x1]
    %v1525 = vlaneseq
    %v1526 = vshrl.u32 %v1525, 7
    %v1527 = vsub.s32 0, %v1526
    %v1528 = vrot.slane %v1524, %v1527
    %1529 = vmatprep.subr.mxu0 0.0
    %1530 = vmatpush1.msra.mxu0 %v1492
    %1531 = vmatprep.subr.mxu0 0.0
    %1532 = vmatpush1.msra.mxu0 %v1493
    %1533 = vmatprep.subr.mxu0 0.0
    %1534 = vmatpush1.msra.mxu0 %v1494
    %1535 = vmatprep.subr.mxu0 0.0
    %1536 = vmatpush1.msra.mxu0 %v1495
    %1537 = vmatprep.subr.mxu0 0.0
    %1538 = vmatpush1.msra.mxu0 %v1496
    %1539 = vmatprep.subr.mxu0 0.0
    %1540 = vmatpush1.msra.mxu0 %v1497
    %1541 = vmatprep.subr.mxu0 0.0
    %1542 = vmatpush1.msra.mxu0 %v1498
    %1543 = vmatprep.subr.mxu0 0.0
    %1544 = vmatpush1.msra.mxu0 %v1499
    %1545 = vmatprep.subr.mxu0 0.0
    %1546 = vmatpush1.msra.mxu0 %v1500
    %1547 = vmatprep.subr.mxu0 0.0
    %1548 = vmatpush1.msra.mxu0 %v1501
    %1549 = vmatprep.subr.mxu0 0.0
    %1550 = vmatpush1.msra.mxu0 %v1502
    %1551 = vmatprep.subr.mxu0 0.0
    %1552 = vmatpush1.msra.mxu0 %v1503
    %1553 = vmatprep.subr.mxu0 0.0
    %1554 = vmatpush1.msra.mxu0 %v1504
    %1555 = vmatprep.subr.mxu0 0.0
    %1556 = vmatpush1.msra.mxu0 %v1505
    %1557 = vmatprep.subr.mxu0 0.0
    %1558 = vmatpush1.msra.mxu0 %v1506
    %1559 = vmatprep.subr.mxu0 0.0
    %1560 = vmatpush1.msra.mxu0 %v1507
    %1561 = vmatprep.subr.mxu0 0.0
    %1562 = vmatpush1.msra.mxu0 %v1508
    %1563 = vmatprep.subr.mxu0 0.0
    %1564 = vmatpush1.msra.mxu0 %v1509
    %1565 = vmatprep.subr.mxu0 0.0
    %1566 = vmatpush1.msra.mxu0 %v1510
    %1567 = vmatprep.subr.mxu0 0.0
    %1568 = vmatpush1.msra.mxu0 %v1511
    %1569 = vmatprep.subr.mxu0 0.0
    %1570 = vmatpush1.msra.mxu0 %v1512
    %1571 = vmatprep.subr.mxu0 0.0
    %1572 = vmatpush1.msra.mxu0 %v1513
    %1573 = vmatprep.subr.mxu0 0.0
    %1574 = vmatpush1.msra.mxu0 %v1514
    %1575 = vmatprep.subr.mxu0 0.0
    %1576 = vmatpush1.msra.mxu0 %v1515
    %1577 = vmatprep.subr.mxu0 0.0
    %1578 = vmatpush1.msra.mxu0 %v1516
    %1579 = vmatprep.subr.mxu0 0.0
    %1580 = vmatpush1.msra.mxu0 %v1517
    %1581 = vmatprep.subr.mxu0 0.0
    %1582 = vmatpush1.msra.mxu0 %v1518
    %1583 = vmatprep.subr.mxu0 0.0
    %1584 = vmatpush1.msra.mxu0 %v1519
    %1585 = vmatprep.subr.mxu0 0.0
    %1586 = vmatpush1.msra.mxu0 %v1520
    %1587 = vmatprep.subr.mxu0 0.0
    %1588 = vmatpush1.msra.mxu0 %v1521
    %1589 = vmatprep.subr.mxu0 0.0
    %1590 = vmatpush1.msra.mxu0 %v1522
    %1591 = vmatprep.subr.mxu0 0.0
    %1592 = vmatpush1.msra.mxu0 %v1523
    %1593 = vmatprep.mubr.f32.mxu0 %v1491
    %1594 = vmatmul.mubr.f32.gmra.mrb[0].mxu0 %v1490
    %v1595 = vpop.f32.mrb[0].mxu0
    %v1596 = vadd.f32 %v1528, %v1595
    %v1597 = vpop.f32.mrb[0].mxu0
    %1598 = vdwg.mxu0
    %v1599 = vtanh.pop %v1596
    %1600 = vst [vmem:[#allocation2 + $0x10] sm:$0xff] %v1599
    %s1601 = scalar_lea.vmem %s0, 56
    %v1602 = vld [vmem:[%s1601] sm:$0xff]
    %1603 = vst [vmem:[#allocation2] sm:$0xff] %v1602
    %v1604 = vld [vmem:[#allocation2] sm:$0xff]
    %v1605 = vld [vmem:[#allocation2 + $0x8] sm:$0xff]
    %v1606 = vld [vmem:[%s1] sm:$0xff]
    %v1607 = vld [vmem:[%s1 + $0x8] sm:$0xff]
    %v1608 = vld [vmem:[%s1 + $0x10] sm:$0xff]
    %v1609 = vld [vmem:[%s1 + $0x18] sm:$0xff]
    %v1610 = vld [vmem:[%s1 + $0x20] sm:$0xff]
    %v1611 = vld [vmem:[%s1 + $0x28] sm:$0xff]
    %v1612 = vld [vmem:[%s1 + $0x30] sm:$0xff]
    %v1613 = vld [vmem:[%s1 + $0x38] sm:$0xff]
    %v1614 = vld [vmem:[%s1 + $0x40] sm:$0xff]
    %v1615 = vld [vmem:[%s1 + $0x48] sm:$0xff]
    %v1616 = vld [vmem:[%s1 + $0x50] sm:$0xff]
    %v1617 = vld [vmem:[%s1 + $0x58] sm:$0xff]
    %v1618 = vld [vmem:[%s1 + $0x60] sm:$0xff]
    %v1619 = vld [vmem:[%s1 + $0x68] sm:$0xff]
    %v1620 = vld [vmem:[%s1 + $0x70] sm:$0xff]
    %v1621 = vld [vmem:[%s1 + $0x78] sm:$0xff]
    %v1622 = vld [vmem:[%s1 + $0x80] sm:$0xff]
    %v1623 = vld [vmem:[%s1 + $0x88] sm:$0xff]
    %v1624 = vld [vmem:[%s1 + $0x90] sm:$0xff]
    %v1625 = vld [vmem:[%s1 + $0x98] sm:$0xff]
    %v1626 = vld [vmem:[%s1 + $0xa0] sm:$0xff]
    %v1627 = vld [vmem:[%s1 + $0xa8] sm:$0xff]
    %v1628 = vld [vmem:[%s1 + $0xb0] sm:$0xff]
    %v1629 = vld [vmem:[%s1 + $0xb8] sm:$0xff]
    %v1630 = vld [vmem:[%s1 + $0xc0] sm:$0xff]
    %v1631 = vld [vmem:[%s1 + $0xc8] sm:$0xff]
    %v1632 = vld [vmem:[%s1 + $0xd0] sm:$0xff]
    %v1633 = vld [vmem:[%s1 + $0xd8] sm:$0xff]
    %v1634 = vld [vmem:[%s1 + $0xe0] sm:$0xff]
    %v1635 = vld [vmem:[%s1 + $0xe8] sm:$0xff]
    %v1636 = vld [vmem:[%s1 + $0xf0] sm:$0xff]
    %v1637 = vld [vmem:[%s1 + $0xf8] sm:$0xff]
    %v1638 = vld [vmem:[%s2] sm:$0x1]
    %v1639 = vlaneseq
    %v1640 = vshrl.u32 %v1639, 7
    %v1641 = vsub.s32 0, %v1640
    %v1642 = vrot.slane %v1638, %v1641
    %1643 = vmatprep.subr.mxu0 0.0
    %1644 = vmatpush1.msra.mxu0 %v1606
    %1645 = vmatprep.subr.mxu0 0.0
    %1646 = vmatpush1.msra.mxu0 %v1607
    %1647 = vmatprep.subr.mxu0 0.0
    %1648 = vmatpush1.msra.mxu0 %v1608
    %1649 = vmatprep.subr.mxu0 0.0
    %1650 = vmatpush1.msra.mxu0 %v1609
    %1651 = vmatprep.subr.mxu0 0.0
    %1652 = vmatpush1.msra.mxu0 %v1610
    %1653 = vmatprep.subr.mxu0 0.0
    %1654 = vmatpush1.msra.mxu0 %v1611
    %1655 = vmatprep.subr.mxu0 0.0
    %1656 = vmatpush1.msra.mxu0 %v1612
    %1657 = vmatprep.subr.mxu0 0.0
    %1658 = vmatpush1.msra.mxu0 %v1613
    %1659 = vmatprep.subr.mxu0 0.0
    %1660 = vmatpush1.msra.mxu0 %v1614
    %1661 = vmatprep.subr.mxu0 0.0
    %1662 = vmatpush1.msra.mxu0 %v1615
    %1663 = vmatprep.subr.mxu0 0.0
    %1664 = vmatpush1.msra.mxu0 %v1616
    %1665 = vmatprep.subr.mxu0 0.0
    %1666 = vmatpush1.msra.mxu0 %v1617
    %1667 = vmatprep.subr.mxu0 0.0
    %1668 = vmatpush1.msra.mxu0 %v1618
    %1669 = vmatprep.subr.mxu0 0.0
    %1670 = vmatpush1.msra.mxu0 %v1619
    %1671 = vmatprep.subr.mxu0 0.0
    %1672 = vmatpush1.msra.mxu0 %v1620
    %1673 = vmatprep.subr.mxu0 0.0
    %1674 = vmatpush1.msra.mxu0 %v1621
    %1675 = vmatprep.subr.mxu0 0.0
    %1676 = vmatpush1.msra.mxu0 %v1622
    %1677 = vmatprep.subr.mxu0 0.0
    %1678 = vmatpush1.msra.mxu0 %v1623
    %1679 = vmatprep.subr.mxu0 0.0
    %1680 = vmatpush1.msra.mxu0 %v1624
    %1681 = vmatprep.subr.mxu0 0.0
    %1682 = vmatpush1.msra.mxu0 %v1625
    %1683 = vmatprep.subr.mxu0 0.0
    %1684 = vmatpush1.msra.mxu0 %v1626
    %1685 = vmatprep.subr.mxu0 0.0
    %1686 = vmatpush1.msra.mxu0 %v1627
    %1687 = vmatprep.subr.mxu0 0.0
    %1688 = vmatpush1.msra.mxu0 %v1628
    %1689 = vmatprep.subr.mxu0 0.0
    %1690 = vmatpush1.msra.mxu0 %v1629
    %1691 = vmatprep.subr.mxu0 0.0
    %1692 = vmatpush1.msra.mxu0 %v1630
    %1693 = vmatprep.subr.mxu0 0.0
    %1694 = vmatpush1.msra.mxu0 %v1631
    %1695 = vmatprep.subr.mxu0 0.0
    %1696 = vmatpush1.msra.mxu0 %v1632
    %1697 = vmatprep.subr.mxu0 0.0
    %1698 = vmatpush1.msra.mxu0 %v1633
    %1699 = vmatprep.subr.mxu0 0.0
    %1700 = vmatpush1.msra.mxu0 %v1634
    %1701 = vmatprep.subr.mxu0 0.0
    %1702 = vmatpush1.msra.mxu0 %v1635
    %1703 = vmatprep.subr.mxu0 0.0
    %1704 = vmatpush1.msra.mxu0 %v1636
    %1705 = vmatprep.subr.mxu0 0.0
    %1706 = vmatpush1.msra.mxu0 %v1637
    %1707 = vmatprep.mubr.f32.mxu0 %v1605
    %1708 = vmatmul.mubr.f32.gmra.mrb[0].mxu0 %v1604
    %v1709 = vpop.f32.mrb[0].mxu0
    %v1710 = vadd.f32 %v1642, %v1709
    %v1711 = vpop.f32.mrb[0].mxu0
    %1712 = vdwg.mxu0
    %v1713 = vtanh.pop %v1710
    %1714 = vst [vmem:[#allocation2 + $0x8] sm:$0xff] %v1713
    %v1715 = vld [vmem:[#allocation2 + $0x8] sm:$0xff]
    %v1716 = vld [vmem:[#allocation2 + $0x10] sm:$0xff]
    %v1717 = vld [vmem:[%s1 + $0x100] sm:$0xff]
    %v1718 = vld [vmem:[%s1 + $0x108] sm:$0xff]
    %v1719 = vld [vmem:[%s1 + $0x110] sm:$0xff]
    %v1720 = vld [vmem:[%s1 + $0x118] sm:$0xff]
    %v1721 = vld [vmem:[%s1 + $0x120] sm:$0xff]
    %v1722 = vld [vmem:[%s1 + $0x128] sm:$0xff]
    %v1723 = vld [vmem:[%s1 + $0x130] sm:$0xff]
    %v1724 = vld [vmem:[%s1 + $0x138] sm:$0xff]
    %v1725 = vld [vmem:[%s1 + $0x140] sm:$0xff]
    %v1726 = vld [vmem:[%s1 + $0x148] sm:$0xff]
    %v1727 = vld [vmem:[%s1 + $0x150] sm:$0xff]
    %v1728 = vld [vmem:[%s1 + $0x158] sm:$0xff]
    %v1729 = vld [vmem:[%s1 + $0x160] sm:$0xff]
    %v1730 = vld [vmem:[%s1 + $0x168] sm:$0xff]
    %v1731 = vld [vmem:[%s1 + $0x170] sm:$0xff]
    %v1732 = vld [vmem:[%s1 + $0x178] sm:$0xff]
    %v1733 = vld [vmem:[%s1 + $0x180] sm:$0xff]
    %v1734 = vld [vmem:[%s1 + $0x188] sm:$0xff]
    %v1735 = vld [vmem:[%s1 + $0x190] sm:$0xff]
    %v1736 = vld [vmem:[%s1 + $0x198] sm:$0xff]
    %v1737 = vld [vmem:[%s1 + $0x1a0] sm:$0xff]
    %v1738 = vld [vmem:[%s1 + $0x1a8] sm:$0xff]
    %v1739 = vld [vmem:[%s1 + $0x1b0] sm:$0xff]
    %v1740 = vld [vmem:[%s1 + $0x1b8] sm:$0xff]
    %v1741 = vld [vmem:[%s1 + $0x1c0] sm:$0xff]
    %v1742 = vld [vmem:[%s1 + $0x1c8] sm:$0xff]
    %v1743 = vld [vmem:[%s1 + $0x1d0] sm:$0xff]
    %v1744 = vld [vmem:[%s1 + $0x1d8] sm:$0xff]
    %v1745 = vld [vmem:[%s1 + $0x1e0] sm:$0xff]
    %v1746 = vld [vmem:[%s1 + $0x1e8] sm:$0xff]
    %v1747 = vld [vmem:[%s1 + $0x1f0] sm:$0xff]
    %v1748 = vld [vmem:[%s1 + $0x1f8] sm:$0xff]
    %v1749 = vld [vmem:[%s2 + $0x1] sm:$0x1]
    %v1750 = vlaneseq
    %v1751 = vshrl.u32 %v1750, 7
    %v1752 = vsub.s32 0, %v1751
    %v1753 = vrot.slane %v1749, %v1752
    %1754 = vmatprep.subr.mxu0 0.0
    %1755 = vmatpush1.msra.mxu0 %v1717
    %1756 = vmatprep.subr.mxu0 0.0
    %1757 = vmatpush1.msra.mxu0 %v1718
    %1758 = vmatprep.subr.mxu0 0.0
    %1759 = vmatpush1.msra.mxu0 %v1719
    %1760 = vmatprep.subr.mxu0 0.0
    %1761 = vmatpush1.msra.mxu0 %v1720
    %1762 = vmatprep.subr.mxu0 0.0
    %1763 = vmatpush1.msra.mxu0 %v1721
    %1764 = vmatprep.subr.mxu0 0.0
    %1765 = vmatpush1.msra.mxu0 %v1722
    %1766 = vmatprep.subr.mxu0 0.0
    %1767 = vmatpush1.msra.mxu0 %v1723
    %1768 = vmatprep.subr.mxu0 0.0
    %1769 = vmatpush1.msra.mxu0 %v1724
    %1770 = vmatprep.subr.mxu0 0.0
    %1771 = vmatpush1.msra.mxu0 %v1725
    %1772 = vmatprep.subr.mxu0 0.0
    %1773 = vmatpush1.msra.mxu0 %v1726
    %1774 = vmatprep.subr.mxu0 0.0
    %1775 = vmatpush1.msra.mxu0 %v1727
    %1776 = vmatprep.subr.mxu0 0.0
    %1777 = vmatpush1.msra.mxu0 %v1728
    %1778 = vmatprep.subr.mxu0 0.0
    %1779 = vmatpush1.msra.mxu0 %v1729
    %1780 = vmatprep.subr.mxu0 0.0
    %1781 = vmatpush1.msra.mxu0 %v1730
    %1782 = vmatprep.subr.mxu0 0.0
    %1783 = vmatpush1.msra.mxu0 %v1731
    %1784 = vmatprep.subr.mxu0 0.0
    %1785 = vmatpush1.msra.mxu0 %v1732
    %1786 = vmatprep.subr.mxu0 0.0
    %1787 = vmatpush1.msra.mxu0 %v1733
    %1788 = vmatprep.subr.mxu0 0.0
    %1789 = vmatpush1.msra.mxu0 %v1734
    %1790 = vmatprep.subr.mxu0 0.0
    %1791 = vmatpush1.msra.mxu0 %v1735
    %1792 = vmatprep.subr.mxu0 0.0
    %1793 = vmatpush1.msra.mxu0 %v1736
    %1794 = vmatprep.subr.mxu0 0.0
    %1795 = vmatpush1.msra.mxu0 %v1737
    %1796 = vmatprep.subr.mxu0 0.0
    %1797 = vmatpush1.msra.mxu0 %v1738
    %1798 = vmatprep.subr.mxu0 0.0
    %1799 = vmatpush1.msra.mxu0 %v1739
    %1800 = vmatprep.subr.mxu0 0.0
    %1801 = vmatpush1.msra.mxu0 %v1740
    %1802 = vmatprep.subr.mxu0 0.0
    %1803 = vmatpush1.msra.mxu0 %v1741
    %1804 = vmatprep.subr.mxu0 0.0
    %1805 = vmatpush1.msra.mxu0 %v1742
    %1806 = vmatprep.subr.mxu0 0.0
    %1807 = vmatpush1.msra.mxu0 %v1743
    %1808 = vmatprep.subr.mxu0 0.0
    %1809 = vmatpush1.msra.mxu0 %v1744
    %1810 = vmatprep.subr.mxu0 0.0
    %1811 = vmatpush1.msra.mxu0 %v1745
    %1812 = vmatprep.subr.mxu0 0.0
    %1813 = vmatpush1.msra.mxu0 %v1746
    %1814 = vmatprep.subr.mxu0 0.0
    %1815 = vmatpush1.msra.mxu0 %v1747
    %1816 = vmatprep.subr.mxu0 0.0
    %1817 = vmatpush1.msra.mxu0 %v1748
    %1818 = vmatprep.mubr.f32.mxu0 %v1716
    %1819 = vmatmul.mubr.f32.gmra.mrb[0].mxu0 %v1715
    %v1820 = vpop.f32.mrb[0].mxu0
    %v1821 = vadd.f32 %v1753, %v1820
    %v1822 = vpop.f32.mrb[0].mxu0
    %1823 = vdwg.mxu0
    %v1824 = vtanh.pop %v1821
    %1825 = vst [vmem:[#allocation2 + $0x10] sm:$0xff] %v1824
    // Predicated region
    $region26: #{rnn_forward.1} parent=1 // pred_check
      %p1826 = pneg %p21
    $region27: #{rnn_forward.1} parent=1 // pred_check_branch
      %1828 = sbr.rel (%p1826) target = $region29
    $region28: #{rnn_forward.1} parent=1 // pred_region
      %v1829 = vld [vmem:[#allocation2 + $0x10] sm:$0xff]
      %v1830 = vld [vmem:[%s3] sm:$0xff]
      %v1831 = vld [vmem:[%s3 + $0x8] sm:$0xff]
      %v1832 = vld [vmem:[%s3 + $0x10] sm:$0xff]
      %v1833 = vld [vmem:[%s3 + $0x18] sm:$0xff]
      %v1834 = vld [vmem:[%s3 + $0x20] sm:$0xff]
      %v1835 = vld [vmem:[%s3 + $0x28] sm:$0xff]
      %v1836 = vld [vmem:[%s3 + $0x30] sm:$0xff]
      %v1837 = vld [vmem:[%s3 + $0x38] sm:$0xff]
      %v1838 = vld [vmem:[%s3 + $0x40] sm:$0xff]
      %v1839 = vld [vmem:[%s3 + $0x48] sm:$0xff]
      %v1840 = vld [vmem:[%s3 + $0x50] sm:$0xff]
      %v1841 = vld [vmem:[%s3 + $0x58] sm:$0xff]
      %v1842 = vld [vmem:[%s3 + $0x60] sm:$0xff]
      %v1843 = vld [vmem:[%s3 + $0x68] sm:$0xff]
      %v1844 = vld [vmem:[%s3 + $0x70] sm:$0xff]
      %v1845 = vld [vmem:[%s3 + $0x78] sm:$0xff]
      %v1846 = vld [vmem:[%s4] sm:$0x1]
      %v1848 = vlaneseq
      %v1849 = vshrl.u32 %v1848, 7
      %v1850 = vsub.s32 0, %v1849
      %v1851 = vrot.slane %v1846, %v1850
      %1853 = vmatprep.subr.mxu0 0.0
      %1854 = vmatpush1.msra.mxu0 %v1830
      %1855 = vmatprep.subr.mxu0 0.0
      %1856 = vmatpush1.msra.mxu0 %v1831
      %1857 = vmatprep.subr.mxu0 0.0
      %1858 = vmatpush1.msra.mxu0 %v1832
      %1859 = vmatprep.subr.mxu0 0.0
      %1860 = vmatpush1.msra.mxu0 %v1833
      %1861 = vmatprep.subr.mxu0 0.0
      %1862 = vmatpush1.msra.mxu0 %v1834
      %1863 = vmatprep.subr.mxu0 0.0
      %1864 = vmatpush1.msra.mxu0 %v1835
      %1865 = vmatprep.subr.mxu0 0.0
      %1866 = vmatpush1.msra.mxu0 %v1836
      %1867 = vmatprep.subr.mxu0 0.0
      %1868 = vmatpush1.msra.mxu0 %v1837
      %1869 = vmatprep.subr.mxu0 0.0
      %1870 = vmatpush1.msra.mxu0 %v1838
      %1871 = vmatprep.subr.mxu0 0.0
      %1872 = vmatpush1.msra.mxu0 %v1839
      %1873 = vmatprep.subr.mxu0 0.0
      %1874 = vmatpush1.msra.mxu0 %v1840
      %1875 = vmatprep.subr.mxu0 0.0
      %1876 = vmatpush1.msra.mxu0 %v1841
      %1877 = vmatprep.subr.mxu0 0.0
      %1878 = vmatpush1.msra.mxu0 %v1842
      %1879 = vmatprep.subr.mxu0 0.0
      %1880 = vmatpush1.msra.mxu0 %v1843
      %1881 = vmatprep.subr.mxu0 0.0
      %1882 = vmatpush1.msra.mxu0 %v1844
      %1883 = vmatprep.subr.mxu0 0.0
      %1884 = vmatpush1.msra.mxu0 %v1845
      %1885 = vmatprep.subr.mxu0 0.0
      %1886 = vmatpush1.msra.mxu0 0.0
      %1887 = vmatprep.subr.mxu0 0.0
      %1888 = vmatpush1.msra.mxu0 0.0
      %1889 = vmatprep.subr.mxu0 0.0
      %1890 = vmatpush1.msra.mxu0 0.0
      %1891 = vmatprep.subr.mxu0 0.0
      %1892 = vmatpush1.msra.mxu0 0.0
      %1893 = vmatprep.subr.mxu0 0.0
      %1894 = vmatpush1.msra.mxu0 0.0
      %1895 = vmatprep.subr.mxu0 0.0
      %1896 = vmatpush1.msra.mxu0 0.0
      %1897 = vmatprep.subr.mxu0 0.0
      %1898 = vmatpush1.msra.mxu0 0.0
      %1899 = vmatprep.subr.mxu0 0.0
      %1900 = vmatpush1.msra.mxu0 0.0
      %1901 = vmatprep.subr.mxu0 0.0
      %1902 = vmatpush1.msra.mxu0 0.0
      %1903 = vmatprep.subr.mxu0 0.0
      %1904 = vmatpush1.msra.mxu0 0.0
      %1905 = vmatprep.subr.mxu0 0.0
      %1906 = vmatpush1.msra.mxu0 0.0
      %1907 = vmatprep.subr.mxu0 0.0
      %1908 = vmatpush1.msra.mxu0 0.0
      %1909 = vmatprep.subr.mxu0 0.0
      %1910 = vmatpush1.msra.mxu0 0.0
      %1911 = vmatprep.subr.mxu0 0.0
      %1912 = vmatpush1.msra.mxu0 0.0
      %1913 = vmatprep.subr.mxu0 0.0
      %1914 = vmatpush1.msra.mxu0 0.0
      %1915 = vmatprep.subr.mxu0 0.0
      %1916 = vmatpush1.msra.mxu0 0.0
      %1917 = vmatprep.mubr.f32.mxu0 0.0
      %1918 = vmatmul.mubr.f32.gmra.mrb[0].mxu0 %v1829
      %v1919 = vpop.f32.mrb[0].mxu0
      %v1920 = vadd.f32 %v1851, %v1919
      %v1921 = vpop.f32.mrb[0].mxu0
      %1922 = vdwg.mxu0
      %1923 = vst [vmem:[#allocation3] sm:$0xff] %v1920
    $region29: #{rnn_forward.1} parent=1 // pred_fallthru
      _
    // Predicated region
    $region30: #{rnn_forward.1} parent=1 // pred_check
      _
    $region31: #{rnn_forward.1} parent=1 // pred_check_branch
      %1925 = sbr.rel (0) target = $region33
    $region32: #{rnn_forward.1} parent=1 // pred_region
      %s1927 = ssub.s32 128, 128
      %1928 = vsyncadd [#allocation4], %s1927
      %s1930 = sshll.u32 [#allocation3], 4
      %s1931 = int_to_ptr.vmem [resolvable:$true] %s1930
      %1933 = dma.vmem_to_hbm [thread:$0]  %s1931, 128, %s5, [#allocation4]
    $region33: #{rnn_forward.1} parent=1 // pred_fallthru
      _
    // Predicated region
    $region34: #{rnn_forward.1} parent=1 // pred_check
      _
    $region35: #{rnn_forward.1} parent=1 // pred_check_branch
      %1935 = sbr.rel (0) target = $region37
    $region36: #{rnn_forward.1} parent=1 // pred_region
      %1936 = dma.done [#allocation4], 128
    $region37: #{rnn_forward.1} parent=1 // pred_fallthru
      _
    %1937 = vsyncpa [#allocation4], 1

</llo_original>
